<compile_context>
chip_gen: v7x
topology: tpu7x:2x2x1
jax: 0.10.0
libtpu: 0.0.40
codegen_flags: <defaults>
</compile_context>

<pallas_src>
import numpy as np
import jax
import jax.numpy as jnp
from jax.experimental import pallas as pl
from jax.experimental.pallas import tpu as pltpu


# ----------------------------------------------------------------------------
# Host-side construction of the fused pool+upsample spatial matrices
# ----------------------------------------------------------------------------
def _bilinear_1d(k, out):
    """1D bilinear interpolation matrix (align_corners=True): (k_in, out)."""
    u = np.zeros((k, out), np.float32)
    if k == 1:
        u[0, :] = 1.0
        return u
    scale = (k - 1) / (out - 1)
    for i in range(out):
        src = i * scale
        i0 = min(int(np.floor(src)), k - 2)
        t = src - i0
        u[i0, i] += 1.0 - t
        u[i0 + 1, i] += t
    return u


def _adaptive_pool_matrix(h, w, k):
    """AdaptiveAvgPool2d(k) as a (H*W, k*k) matrix acting on flattened HW."""
    p = np.zeros((h * w, k * k), np.float32)
    for ph in range(k):
        hs, he = (ph * h) // k, -(-((ph + 1) * h) // k)
        for pw in range(k):
            ws, we = (pw * w) // k, -(-((pw + 1) * w) // k)
            area = float((he - hs) * (we - ws))
            for hh in range(hs, he):
                for ww in range(ws, we):
                    p[hh * w + ww, ph * k + pw] = 1.0 / area
    return p


def build_pool_upsample_matrix(h, w, out_size, scales=(1, 2, 4, 8)):
    """Concatenated pool+bilinear-upsample matrix: (H*W, len(scales)*out_size^2)."""
    mats = []
    for k in scales:
        pool = _adaptive_pool_matrix(h, w, k)          # (HW, k^2)
        u1 = _bilinear_1d(k, out_size)
        up = np.kron(u1, u1)                           # (k^2, out^2)
        mats.append(pool @ up)                         # (HW, out^2)
    return np.concatenate(mats, axis=1).astype(np.float32)   # (HW, 4*out^2)


# ----------------------------------------------------------------------------
# Pallas kernel: whole PPM forward for one batch element per grid step
# ----------------------------------------------------------------------------
def _ppm_kernel(x_ref, w_ref, b_ref, a_ref, o_ref):
    # x_ref: (1, Cin, HW)       bf16  input feature map, spatial on lanes
    # w_ref: (Cout, Cin)        bf16  1x1 conv weight
    # b_ref: (Cout, 1)          f32   1x1 conv bias
    # a_ref: (HW, 4*OUT2)       bf16  fused pool+upsample matrices (concatenated)
    # o_ref: (1, Cout, 4*OUT2)  f32   lane-dense output slab
    z = (
        jnp.dot(w_ref[...], x_ref[0], preferred_element_type=jnp.float32)
        + b_ref[...]
    )
    o_ref[0] = jnp.dot(
        z.astype(jnp.bfloat16), a_ref[...], preferred_element_type=jnp.float32
    )


def ppm_forward(x_flat, w, b_col, a_cat):
    """x_flat:(N,Cin,HW) bf16, w:(Cout,Cin) bf16, b_col:(Cout,1) f32,
    a_cat:(HW,4*OUT2) bf16  ->  (N, Cout, 4*OUT2) f32."""
    n, cin, hw = x_flat.shape
    cout = w.shape[0]
    out_w = a_cat.shape[1]

    flops = 2 * n * (cout * cin * hw + cout * hw * out_w)
    bytes_accessed = (
        x_flat.size * 2 + w.size * 2 + a_cat.size * 2
        + b_col.size * 4 + n * cout * out_w * 4
    )

    return pl.pallas_call(
        _ppm_kernel,
        out_shape=jax.ShapeDtypeStruct((n, cout, out_w), jnp.float32),
        grid=(n,),
        in_specs=[
            pl.BlockSpec((1, cin, hw), lambda i: (i, 0, 0)),
            pl.BlockSpec((cout, cin), lambda i: (0, 0)),
            pl.BlockSpec((cout, 1), lambda i: (0, 0)),
            pl.BlockSpec((hw, out_w), lambda i: (0, 0)),
        ],
        out_specs=pl.BlockSpec((1, cout, out_w), lambda i: (i, 0, 0)),
        compiler_params=pltpu.CompilerParams(
            dimension_semantics=("parallel",),
        ),
        cost_estimate=pl.CostEstimate(
            flops=flops, transcendentals=0, bytes_accessed=bytes_accessed
        ),
    )(x_flat, w, b_col, a_cat)


# ----------------------------------------------------------------------------
# Pure-JAX reference in the ORIGINAL op order (pool -> conv -> upsample), f32
# ----------------------------------------------------------------------------
def ppm_reference(x, w, b, h, w_sp, out_size):
    n, c = x.shape[0], x.shape[1]
    xf = x.reshape(n, c, h * w_sp)
    hp = jax.lax.Precision.HIGHEST
    outs = []
    for k in (1, 2, 4, 8):
        pool = jnp.asarray(_adaptive_pool_matrix(h, w_sp, k))
        u1 = _bilinear_1d(k, out_size)
        up = jnp.asarray(np.kron(u1, u1))
        pooled = jnp.einsum("nch,hp->ncp", xf, pool, precision=hp)
        z = jnp.einsum("oc,ncp->nop", w, pooled, precision=hp) + b[None, :, None]
        y = jnp.einsum("nop,pq->noq", z, up, precision=hp)
        outs.append(y.reshape(n, -1, out_size, out_size))
    return jnp.concatenate(outs, axis=1)


# ----------------------------------------------------------------------------
# Main
# ----------------------------------------------------------------------------
if __name__ == "__main__":
    N, CIN, H, W_SP = 2, 512, 16, 16        # module hardcodes Conv2d(512, 128, 1)
    COUT, OUT_SIZE = 128, 16                # module hardcodes Upsample(16)
    OUT2 = OUT_SIZE * OUT_SIZE

    key = jax.random.PRNGKey(0)
    kx, kw, kb = jax.random.split(key, 3)
    x = jax.random.normal(kx, (N, CIN, H, W_SP), dtype=jnp.float32)
    w = jax.random.normal(kw, (COUT, CIN), dtype=jnp.float32) * (1.0 / np.sqrt(CIN))
    b = jax.random.normal(kb, (COUT,), dtype=jnp.float32) * 0.1

    a_cat = jnp.asarray(build_pool_upsample_matrix(H, W_SP, OUT_SIZE))  # (256, 1024)

    @jax.jit
    def ppm(x, w, b, a_cat):
        n = x.shape[0]
        x_flat = x.reshape(n, CIN, H * W_SP).astype(jnp.bfloat16)
        out = ppm_forward(
            x_flat,
            w.astype(jnp.bfloat16),
            b.reshape(COUT, 1).astype(jnp.float32),
            a_cat.astype(jnp.bfloat16),
        )                                               # (N, Cout, 4*OUT2)
        # Branch-major NCHW layout plumbing (outside the kernel):
        out = out.reshape(n, COUT, 4, OUT2)
        out = out.transpose(0, 2, 1, 3).reshape(n, 4 * COUT, OUT_SIZE, OUT_SIZE)
        return out

    out = jax.block_until_ready(ppm(x, w, b, a_cat))

    ref = ppm_reference(x, w, b, H, W_SP, OUT_SIZE)
    err = float(jnp.max(jnp.abs(out - ref)))
    scale = float(jnp.max(jnp.abs(ref)))

    assert out.shape == (N, 4 * COUT, OUT_SIZE, OUT_SIZE)
    assert bool(jnp.all(jnp.isfinite(out)))
    # bf16 operands / f32 accumulation: compare in relative terms.
    assert err <= 2e-2 * max(1.0, scale), (
        f"max abs diff {err} vs reference scale {scale}"
    )
    print("KERNEL_OK")
</pallas_src>

<mosaic_0001>
module attributes {stable_mosaic.version = 11 : i64} {
  func.func @_ppm_kernel(%arg0: i32, %arg1: memref<1x512x256xbf16, #tpu.memory_space<vmem>>, %arg2: memref<128x512xbf16, #tpu.memory_space<vmem>>, %arg3: memref<128x1xf32, #tpu.memory_space<vmem>>, %arg4: memref<256x1024xbf16, #tpu.memory_space<vmem>>, %arg5: memref<1x128x1024xf32, #tpu.memory_space<vmem>>) attributes {dimension_semantics = [#tpu.dimension_semantics<parallel>], iteration_bounds = array<i64: 2>, scalar_prefetch = 0 : i64, scratch_operands = 0 : i64, tpu.core_type = #tpu.core_type<tc>, window_params = [{transform_indices = @transform_0, window_bounds = array<i64: 1, 512, 256>}, {pipeline_mode = #tpu.pipeline_mode<synchronous>, transform_indices = @transform_1, window_bounds = array<i64: 128, 512>}, {pipeline_mode = #tpu.pipeline_mode<synchronous>, transform_indices = @transform_2, window_bounds = array<i64: 128, 1>}, {pipeline_mode = #tpu.pipeline_mode<synchronous>, transform_indices = @transform_3, window_bounds = array<i64: 256, 1024>}, {transform_indices = @transform_4, window_bounds = array<i64: 1, 128, 1024>}]} {
    %c0 = arith.constant 0 : index
    %c0_0 = arith.constant 0 : index
    %0 = vector.load %arg2[%c0, %c0_0] : memref<128x512xbf16, #tpu.memory_space<vmem>>, vector<128x512xbf16>
    %c0_1 = arith.constant 0 : index
    %c0_2 = arith.constant 0 : index
    %c0_3 = arith.constant 0 : index
    %1 = vector.load %arg1[%c0_1, %c0_2, %c0_3] : memref<1x512x256xbf16, #tpu.memory_space<vmem>>, vector<1x512x256xbf16>
    %2 = vector.shape_cast %1 : vector<1x512x256xbf16> to vector<512x256xbf16>
    %cst = arith.constant dense<0.000000e+00> : vector<128x256xf32>
    %3 = tpu.matmul %0, %2, %cst {dimension_numbers = #tpu.dot_dimension_numbers<[1], [0], [0], [1], [0, 0, 1, 1], [], []>} : vector<128x512xbf16>, vector<512x256xbf16>, vector<128x256xf32> -> vector<128x256xf32>
    %c0_4 = arith.constant 0 : index
    %c0_5 = arith.constant 0 : index
    %4 = vector.load %arg3[%c0_4, %c0_5] : memref<128x1xf32, #tpu.memory_space<vmem>>, vector<128x1xf32>
    %5 = vector.broadcast %4 : vector<128x1xf32> to vector<128x256xf32>
    %6 = arith.addf %3, %5 : vector<128x256xf32>
    %7 = arith.truncf %6 : vector<128x256xf32> to vector<128x256xbf16>
    %c0_6 = arith.constant 0 : index
    %c0_7 = arith.constant 0 : index
    %8 = vector.load %arg4[%c0_6, %c0_7] : memref<256x1024xbf16, #tpu.memory_space<vmem>>, vector<256x1024xbf16>
    %cst_8 = arith.constant dense<0.000000e+00> : vector<128x1024xf32>
    %9 = tpu.matmul %7, %8, %cst_8 {dimension_numbers = #tpu.dot_dimension_numbers<[1], [0], [0], [1], [0, 0, 1, 1], [], []>} : vector<128x256xbf16>, vector<256x1024xbf16>, vector<128x1024xf32> -> vector<128x1024xf32>
    %c0_9 = arith.constant 0 : index
    %c0_10 = arith.constant 0 : index
    %c0_11 = arith.constant 0 : index
    %10 = vector.load %arg5[%c0_9, %c0_10, %c0_11] : memref<1x128x1024xf32, #tpu.memory_space<vmem>>, vector<1x128x1024xf32>
    %11 = vector.shape_cast %10 : vector<1x128x1024xf32> to vector<128x1024xf32>
    %12 = vector.shape_cast %9 : vector<128x1024xf32> to vector<1x128x1024xf32>
    tpu.vector_store %arg5[%c0_9, %c0_10, %c0_11], %12 {strides = array<i32>} : memref<1x128x1024xf32, #tpu.memory_space<vmem>>, vector<1x128x1024xf32>,
    return
  }
  func.func @transform_0(%arg0: i32) -> (i32, i32, i32) {
    %c0_i32 = arith.constant 0 : i32
    %c0_i32_0 = arith.constant 0 : i32
    %c0_i32_1 = arith.constant 0 : i32
    return %arg0, %c0_i32, %c0_i32_0 : i32, i32, i32
  }
  func.func @transform_1(%arg0: i32) -> (i32, i32) {
    %c0_i32 = arith.constant 0 : i32
    %c0_i32_0 = arith.constant 0 : i32
    %c0_i32_1 = arith.constant 0 : i32
    return %c0_i32, %c0_i32_0 : i32, i32
  }
  func.func @transform_2(%arg0: i32) -> (i32, i32) {
    %c0_i32 = arith.constant 0 : i32
    %c0_i32_0 = arith.constant 0 : i32
    %c0_i32_1 = arith.constant 0 : i32
    return %c0_i32, %c0_i32_0 : i32, i32
  }
  func.func @transform_3(%arg0: i32) -> (i32, i32) {
    %c0_i32 = arith.constant 0 : i32
    %c0_i32_0 = arith.constant 0 : i32
    %c0_i32_1 = arith.constant 0 : i32
    return %c0_i32, %c0_i32_0 : i32, i32
  }
  func.func @transform_4(%arg0: i32) -> (i32, i32, i32) {
    %c0_i32 = arith.constant 0 : i32
    %c0_i32_0 = arith.constant 0 : i32
    %c0_i32_1 = arith.constant 0 : i32
    return %arg0, %c0_i32, %c0_i32_0 : i32, i32, i32
  }
}

</mosaic_0001>

<llo_original>
// kernel: ppm.1
$region0: #{ppm.1}
  #allocation0 [shape = 'u32[]', space=smem, size = 0x4, offset = 0x4, fixed_abs, tag = 'smem constant byte address 0x4 - core index']
  #allocation1 [shape = 'u32[144,128]{1,0:T(1,128)}', space=vmem, size = 0x12000, scoped, tag = 'internal scratch']
  %s0 = inlined_call_operand.vmem [shape: bf16[2,512,256], index: 0, kind: input, shape index: {}]
  %s1 = inlined_call_operand.vmem [shape: bf16[128,512], index: 1, kind: input, shape index: {}]
  %s2 = inlined_call_operand.vmem [shape: f32[128,1], index: 2, kind: input, shape index: {}]
  %s3 = inlined_call_operand.vmem [shape: bf16[256,1024], index: 3, kind: input, shape index: {}]
  %s4 = inlined_call_operand.vmem [shape: f32[2,128,1024], index: 4, kind: output, shape index: {}]
  %s5 = sld [smem:[#allocation0]]
  $region49: #{ppm.1} parent=0
    _
  %s7 = ssub.s32 1, %s5
  %s8 = scalar_select 0, %s7, %s5
  loop: start=0, step=1, limit=4
  $region2: #{ppm.1} parent=0 // loop_pre_header
    _
  $region3: #{ppm.1} parent=0 // loop_header
    %s10 = sphi 0, %s14
    %p11 = scmp.ge.s32.totalorder %s10, 4
    %s20 = sphi 0, %s22
    %s23 = sphi 0, %s20
    %s24 = sphi 0, %s23
    %s40 = sphi 0, %s24
    %s44 = sphi 0, %s44
    %s46 = sphi 0, %s44
    %s47 = sphi 0, %s46
    %s61 = sphi 0, %s47
    %s65 = sphi 0, %s65
    %s67 = sphi 0, %s65
    %s68 = sphi 0, %s67
    %s82 = sphi 0, %s68
    %s86 = sphi 0, %s86
    %s88 = sphi 0, %s86
    %s89 = sphi 0, %s88
    %s103 = sphi 0, %s89
    %s109 = sphi 0, %s111
    %s112 = sphi 0, %s109
    %s113 = sphi 0, %s112
    %s129 = sphi 0, %s113
  $region4: #{ppm.1} parent=0 // loop_header_branch
    %13 = sbr.rel (%p11) target = $region8
  $region5: #{ppm.1} parent=0 // loop_body
    %s15 = ssub.s32 %s10, 1
    %s16 = ssub.s32 %s10, 2
    %s17 = sadd.s32 %s10, 1
    %s18 = ssub.s32 %s10, %s17
    %p19 = scmp.eq.s32.totalorder %s18, 0
    %s21 = sadd.s32 %s20, 1
    %s22 = scalar_select %p19, %s20, %s21
    %p25 = pneg %p19
    %p26 = scmp.eq.s32.totalorder %s10, 1
    %p27 = por %p25, %p26
    %p28 = scmp.ne.s32.totalorder %s20, %s23
    %p29 = scmp.eq.s32.totalorder %s10, 0
    %p30 = por %p28, %p29
    %p31 = scmp.ne.s32.totalorder %s20, %s23
    %p32 = scmp.eq.s32.totalorder %s15, 1
    %p33 = por %p31, %p32
    %p34 = scmp.ne.s32.totalorder %s23, %s24
    %p35 = scmp.eq.s32.totalorder %s15, 0
    %p36 = por %p34, %p35
    %p37 = scmp.ne.s32.totalorder %s23, %s24
    %p38 = scmp.eq.s32.totalorder %s16, 1
    %p39 = por %p37, %p38
    %p41 = scmp.ne.s32.totalorder %s24, %s40
    %p42 = scmp.eq.s32.totalorder %s16, 0
    %p43 = por %p41, %p42
    %s45 = sadd.s32 %s44, 1
    %p48 = scmp.eq.s32.totalorder %s10, 1
    %p49 = scmp.ne.s32.totalorder %s44, %s46
    %p50 = scmp.eq.s32.totalorder %s10, 0
    %p51 = por %p49, %p50
    %p52 = scmp.ne.s32.totalorder %s44, %s46
    %p53 = scmp.eq.s32.totalorder %s15, 1
    %p54 = por %p52, %p53
    %p55 = scmp.ne.s32.totalorder %s46, %s47
    %p56 = scmp.eq.s32.totalorder %s15, 0
    %p57 = por %p55, %p56
    %p58 = scmp.ne.s32.totalorder %s46, %s47
    %p59 = scmp.eq.s32.totalorder %s16, 1
    %p60 = por %p58, %p59
    %p62 = scmp.ne.s32.totalorder %s47, %s61
    %p63 = scmp.eq.s32.totalorder %s16, 0
    %p64 = por %p62, %p63
    %s66 = sadd.s32 %s65, 1
    %p69 = scmp.eq.s32.totalorder %s10, 1
    %p70 = scmp.ne.s32.totalorder %s65, %s67
    %p71 = scmp.eq.s32.totalorder %s10, 0
    %p72 = por %p70, %p71
    %p73 = scmp.ne.s32.totalorder %s65, %s67
    %p74 = scmp.eq.s32.totalorder %s15, 1
    %p75 = por %p73, %p74
    %p76 = scmp.ne.s32.totalorder %s67, %s68
    %p77 = scmp.eq.s32.totalorder %s15, 0
    %p78 = por %p76, %p77
    %p79 = scmp.ne.s32.totalorder %s67, %s68
    %p80 = scmp.eq.s32.totalorder %s16, 1
    %p81 = por %p79, %p80
    %p83 = scmp.ne.s32.totalorder %s68, %s82
    %p84 = scmp.eq.s32.totalorder %s16, 0
    %p85 = por %p83, %p84
    %s87 = sadd.s32 %s86, 1
    %p90 = scmp.eq.s32.totalorder %s10, 1
    %p91 = scmp.ne.s32.totalorder %s86, %s88
    %p92 = scmp.eq.s32.totalorder %s10, 0
    %p93 = por %p91, %p92
    %p94 = scmp.ne.s32.totalorder %s86, %s88
    %p95 = scmp.eq.s32.totalorder %s15, 1
    %p96 = por %p94, %p95
    %p97 = scmp.ne.s32.totalorder %s88, %s89
    %p98 = scmp.eq.s32.totalorder %s15, 0
    %p99 = por %p97, %p98
    %p100 = scmp.ne.s32.totalorder %s88, %s89
    %p101 = scmp.eq.s32.totalorder %s16, 1
    %p102 = por %p100, %p101
    %p104 = scmp.ne.s32.totalorder %s89, %s103
    %p105 = scmp.eq.s32.totalorder %s16, 0
    %p106 = por %p104, %p105
    %s107 = ssub.s32 %s10, %s17
    %p108 = scmp.eq.s32.totalorder %s107, 0
    %s110 = sadd.s32 %s109, 1
    %s111 = scalar_select %p108, %s109, %s110
    %p114 = pneg %p108
    %p115 = scmp.eq.s32.totalorder %s10, 1
    %p116 = por %p114, %p115
    %p117 = scmp.ne.s32.totalorder %s109, %s112
    %p118 = scmp.eq.s32.totalorder %s10, 0
    %p119 = por %p117, %p118
    %p120 = scmp.ne.s32.totalorder %s109, %s112
    %p121 = scmp.eq.s32.totalorder %s15, 1
    %p122 = por %p120, %p121
    %p123 = scmp.ne.s32.totalorder %s112, %s113
    %p124 = scmp.eq.s32.totalorder %s15, 0
    %p125 = por %p123, %p124
    %p126 = scmp.ne.s32.totalorder %s112, %s113
    %p127 = scmp.eq.s32.totalorder %s16, 1
    %p128 = por %p126, %p127
    %p130 = scmp.ne.s32.totalorder %s113, %s129
    %p131 = scmp.eq.s32.totalorder %s16, 0
    %p132 = por %p130, %p131
    %p133 = scmp.le.s32.totalorder 1, %s10
    %p134 = scmp.lt.s32.totalorder %s10, 3
    %p135 = pnand %p133, %p134
    %p136 = pneg %p135
    // Predicated region
    $region9: #{ppm.1} parent=5 // pred_check
      _
    $region10: #{ppm.1} parent=5 // pred_check_branch
      %138 = sbr.rel (%p135) target = $region12
    $region11: #{ppm.1} parent=5 // pred_region
      %s139 = ssub.s32 %s10, 1
      // Predicated region
      $region13: #{ppm.1} parent=11 // pred_check
        %p140 = pneg %p57
      $region14: #{ppm.1} parent=11 // pred_check_branch
        %142 = sbr.rel (%p140) target = $region16
      $region15: #{ppm.1} parent=11 // pred_region
        _
      $region16: #{ppm.1} parent=11 // pred_fallthru
        _
      // Predicated region
      $region17: #{ppm.1} parent=11 // pred_check
        %p143 = pneg %p78
      $region18: #{ppm.1} parent=11 // pred_check_branch
        %145 = sbr.rel (%p143) target = $region20
      $region19: #{ppm.1} parent=11 // pred_region
        _
      $region20: #{ppm.1} parent=11 // pred_fallthru
        _
      // Predicated region
      $region21: #{ppm.1} parent=11 // pred_check
        %p146 = pneg %p99
      $region22: #{ppm.1} parent=11 // pred_check_branch
        %148 = sbr.rel (%p146) target = $region24
      $region23: #{ppm.1} parent=11 // pred_region
        _
      $region24: #{ppm.1} parent=11 // pred_fallthru
        _
    $region12: #{ppm.1} parent=5 // pred_fallthru
      _
    %p149 = scmp.lt.s32.totalorder %s10, 2
    // Predicated region
    $region25: #{ppm.1} parent=5 // pred_check
      %p150 = pneg %p149
    $region26: #{ppm.1} parent=5 // pred_check_branch
      %152 = sbr.rel (%p150) target = $region28
    $region27: #{ppm.1} parent=5 // pred_region
      // Predicated region
      $region29: #{ppm.1} parent=27 // pred_check
        %p153 = pneg %p30
      $region30: #{ppm.1} parent=27 // pred_check_branch
        %155 = sbr.rel (%p153) target = $region32
      $region31: #{ppm.1} parent=27 // pred_region
        %p156 = scmp.lt.s32.totalorder %s10, 1
        %s157 = scalar_select %p156, %s10, 1
        %s158 = smul.addr %s157, 128
        %s159 = smul.addr %s158, 4
        %s160 = scalar_lea.vmem %s0, %s159
      $region32: #{ppm.1} parent=27 // pred_fallthru
        _
    $region28: #{ppm.1} parent=5 // pred_fallthru
      _
    %p161 = scmp.le.s32.totalorder 1, %s10
    %p162 = scmp.lt.s32.totalorder %s10, 3
    %p163 = pnand %p161, %p162
    %p164 = pneg %p163
    // Predicated region
    $region33: #{ppm.1} parent=5 // pred_check
      _
    $region34: #{ppm.1} parent=5 // pred_check_branch
      %166 = sbr.rel (%p163) target = $region36
    $region35: #{ppm.1} parent=5 // pred_region
      %s167 = ssub.s32 %s10, 1
      %p168 = scmp.lt.s32.totalorder %s15, 1
      %s169 = scalar_select %p168, %s15, 1
      %s170 = smul.addr %s169, 128
      %s171 = smul.addr %s170, 4
      %s172 = scalar_lea.vmem %s0, %s171
      %p173 = pneg %p36
      %p174 = pneg %p33
      %p175 = pneg %p57
      %p176 = pneg %p54
      %p177 = pneg %p78
      %p178 = pneg %p75
      %p179 = pneg %p99
      %p180 = pneg %p96
      %p181 = pneg %p125
      %p182 = pneg %p122
      %p183 = scmp.lt.s32.totalorder %s15, 1
      %s184 = scalar_select %p183, %s15, 1
      %s185 = smul.addr %s184, 128
      %s186 = smul.addr %s185, 8
      %s187 = scalar_lea.vmem %s4, %s186
      %p188 = scmp.lt.s32.totalorder %s15, 1
      %s189 = scalar_select %p188, %s15, 1
      %s190 = smul.addr %s189, 128
      %s191 = smul.addr %s190, 4
      %s192 = scalar_lea.vmem %s0, %s191
      %p193 = scmp.lt.s32.totalorder %s15, 1
      %s194 = scalar_select %p193, %s15, 1
      %s195 = smul.addr %s194, 128
      %s196 = smul.addr %s195, 8
      %s197 = scalar_lea.vmem %s4, %s196
      %v198 = vld [vmem:[%s1] sm:$0xff]
      %v199 = vld [vmem:[%s1 + $0x8] sm:$0xff]
      %v200 = vld [vmem:[%s1 + $0x10] sm:$0xff]
      %v201 = vld [vmem:[%s1 + $0x18] sm:$0xff]
      %v202 = vld [vmem:[%s1 + $0x20] sm:$0xff]
      %v203 = vld [vmem:[%s1 + $0x28] sm:$0xff]
      %v204 = vld [vmem:[%s1 + $0x30] sm:$0xff]
      %v205 = vld [vmem:[%s1 + $0x38] sm:$0xff]
      %v206 = vld [vmem:[%s1 + $0x40] sm:$0xff]
      %v207 = vld [vmem:[%s1 + $0x48] sm:$0xff]
      %v208 = vld [vmem:[%s1 + $0x50] sm:$0xff]
      %v209 = vld [vmem:[%s1 + $0x58] sm:$0xff]
      %v210 = vld [vmem:[%s1 + $0x60] sm:$0xff]
      %v211 = vld [vmem:[%s1 + $0x68] sm:$0xff]
      %v212 = vld [vmem:[%s1 + $0x70] sm:$0xff]
      %v213 = vld [vmem:[%s1 + $0x78] sm:$0xff]
      %v214 = vld [vmem:[%s1 + $0x80] sm:$0xff]
      %v215 = vld [vmem:[%s1 + $0x88] sm:$0xff]
      %v216 = vld [vmem:[%s1 + $0x90] sm:$0xff]
      %v217 = vld [vmem:[%s1 + $0x98] sm:$0xff]
      %v218 = vld [vmem:[%s1 + $0xa0] sm:$0xff]
      %v219 = vld [vmem:[%s1 + $0xa8] sm:$0xff]
      %v220 = vld [vmem:[%s1 + $0xb0] sm:$0xff]
      %v221 = vld [vmem:[%s1 + $0xb8] sm:$0xff]
      %v222 = vld [vmem:[%s1 + $0xc0] sm:$0xff]
      %v223 = vld [vmem:[%s1 + $0xc8] sm:$0xff]
      %v224 = vld [vmem:[%s1 + $0xd0] sm:$0xff]
      %v225 = vld [vmem:[%s1 + $0xd8] sm:$0xff]
      %v226 = vld [vmem:[%s1 + $0xe0] sm:$0xff]
      %v227 = vld [vmem:[%s1 + $0xe8] sm:$0xff]
      %v228 = vld [vmem:[%s1 + $0xf0] sm:$0xff]
      %v229 = vld [vmem:[%s1 + $0xf8] sm:$0xff]
      %v230 = vld [vmem:[%s192] sm:$0xff]
      %v231 = vld [vmem:[%s192 + $0x8] sm:$0xff]
      %v232 = vld [vmem:[%s192 + $0x10] sm:$0xff]
      %v233 = vld [vmem:[%s192 + $0x18] sm:$0xff]
      %v234 = vld [vmem:[%s192 + $0x20] sm:$0xff]
      %v235 = vld [vmem:[%s192 + $0x28] sm:$0xff]
      %v236 = vld [vmem:[%s192 + $0x30] sm:$0xff]
      %v237 = vld [vmem:[%s192 + $0x38] sm:$0xff]
      %v238 = vld [vmem:[%s192 + $0x40] sm:$0xff]
      %v239 = vld [vmem:[%s192 + $0x48] sm:$0xff]
      %v240 = vld [vmem:[%s192 + $0x50] sm:$0xff]
      %v241 = vld [vmem:[%s192 + $0x58] sm:$0xff]
      %v242 = vld [vmem:[%s192 + $0x60] sm:$0xff]
      %v243 = vld [vmem:[%s192 + $0x68] sm:$0xff]
      %v244 = vld [vmem:[%s192 + $0x70] sm:$0xff]
      %v245 = vld [vmem:[%s192 + $0x78] sm:$0xff]
      %v246 = vld [vmem:[%s192 + $0x80] sm:$0xff]
      %v247 = vld [vmem:[%s192 + $0x88] sm:$0xff]
      %v248 = vld [vmem:[%s192 + $0x90] sm:$0xff]
      %v249 = vld [vmem:[%s192 + $0x98] sm:$0xff]
      %v250 = vld [vmem:[%s192 + $0xa0] sm:$0xff]
      %v251 = vld [vmem:[%s192 + $0xa8] sm:$0xff]
      %v252 = vld [vmem:[%s192 + $0xb0] sm:$0xff]
      %v253 = vld [vmem:[%s192 + $0xb8] sm:$0xff]
      %v254 = vld [vmem:[%s192 + $0xc0] sm:$0xff]
      %v255 = vld [vmem:[%s192 + $0xc8] sm:$0xff]
      %v256 = vld [vmem:[%s192 + $0xd0] sm:$0xff]
      %v257 = vld [vmem:[%s192 + $0xd8] sm:$0xff]
      %v258 = vld [vmem:[%s192 + $0xe0] sm:$0xff]
      %v259 = vld [vmem:[%s192 + $0xe8] sm:$0xff]
      %v260 = vld [vmem:[%s192 + $0xf0] sm:$0xff]
      %v261 = vld [vmem:[%s192 + $0xf8] sm:$0xff]
      %v262 = vld [vmem:[%s192 + $0x100] sm:$0xff]
      %v263 = vld [vmem:[%s192 + $0x108] sm:$0xff]
      %v264 = vld [vmem:[%s192 + $0x110] sm:$0xff]
      %v265 = vld [vmem:[%s192 + $0x118] sm:$0xff]
      %v266 = vld [vmem:[%s192 + $0x120] sm:$0xff]
      %v267 = vld [vmem:[%s192 + $0x128] sm:$0xff]
      %v268 = vld [vmem:[%s192 + $0x130] sm:$0xff]
      %v269 = vld [vmem:[%s192 + $0x138] sm:$0xff]
      %v270 = vld [vmem:[%s192 + $0x140] sm:$0xff]
      %v271 = vld [vmem:[%s192 + $0x148] sm:$0xff]
      %v272 = vld [vmem:[%s192 + $0x150] sm:$0xff]
      %v273 = vld [vmem:[%s192 + $0x158] sm:$0xff]
      %v274 = vld [vmem:[%s192 + $0x160] sm:$0xff]
      %v275 = vld [vmem:[%s192 + $0x168] sm:$0xff]
      %v276 = vld [vmem:[%s192 + $0x170] sm:$0xff]
      %v277 = vld [vmem:[%s192 + $0x178] sm:$0xff]
      %v278 = vld [vmem:[%s192 + $0x180] sm:$0xff]
      %v279 = vld [vmem:[%s192 + $0x188] sm:$0xff]
      %v280 = vld [vmem:[%s192 + $0x190] sm:$0xff]
      %v281 = vld [vmem:[%s192 + $0x198] sm:$0xff]
      %v282 = vld [vmem:[%s192 + $0x1a0] sm:$0xff]
      %v283 = vld [vmem:[%s192 + $0x1a8] sm:$0xff]
      %v284 = vld [vmem:[%s192 + $0x1b0] sm:$0xff]
      %v285 = vld [vmem:[%s192 + $0x1b8] sm:$0xff]
      %v286 = vld [vmem:[%s192 + $0x1c0] sm:$0xff]
      %v287 = vld [vmem:[%s192 + $0x1c8] sm:$0xff]
      %v288 = vld [vmem:[%s192 + $0x1d0] sm:$0xff]
      %v289 = vld [vmem:[%s192 + $0x1d8] sm:$0xff]
      %v290 = vld [vmem:[%s192 + $0x1e0] sm:$0xff]
      %v291 = vld [vmem:[%s192 + $0x1e8] sm:$0xff]
      %v292 = vld [vmem:[%s192 + $0x1f0] sm:$0xff]
      %v293 = vld [vmem:[%s192 + $0x1f8] sm:$0xff]
      %v294 = vld [vmem:[%s2] sm:$0xff]
      %v295 = vld [vmem:[%s2 + $0x8] sm:$0xff]
      %v296 = vld [vmem:[%s2 + $0x10] sm:$0xff]
      %v297 = vld [vmem:[%s2 + $0x18] sm:$0xff]
      %v298 = vld [vmem:[%s2 + $0x20] sm:$0xff]
      %v299 = vld [vmem:[%s2 + $0x28] sm:$0xff]
      %v300 = vld [vmem:[%s2 + $0x30] sm:$0xff]
      %v301 = vld [vmem:[%s2 + $0x38] sm:$0xff]
      %v302 = vld [vmem:[%s2 + $0x40] sm:$0xff]
      %v303 = vld [vmem:[%s2 + $0x48] sm:$0xff]
      %v304 = vld [vmem:[%s2 + $0x50] sm:$0xff]
      %v305 = vld [vmem:[%s2 + $0x58] sm:$0xff]
      %v306 = vld [vmem:[%s2 + $0x60] sm:$0xff]
      %v307 = vld [vmem:[%s2 + $0x68] sm:$0xff]
      %v308 = vld [vmem:[%s2 + $0x70] sm:$0xff]
      %v309 = vld [vmem:[%s2 + $0x78] sm:$0xff]
      %311 = vset.pattern.permute.xlu0 0
      %312 = vperm.xlu0 %311, %v294
      %v313 = vpop.permute.xlu0 %312
      %316 = vset.pattern.permute.xlu0 0
      %317 = vperm.xlu0 %316, %v295
      %v318 = vpop.permute.xlu0 %317
      %321 = vset.pattern.permute.xlu0 0
      %322 = vperm.xlu0 %321, %v296
      %v323 = vpop.permute.xlu0 %322
      %326 = vset.pattern.permute.xlu0 0
      %327 = vperm.xlu0 %326, %v297
      %v328 = vpop.permute.xlu0 %327
      %331 = vset.pattern.permute.xlu0 0
      %332 = vperm.xlu0 %331, %v298
      %v333 = vpop.permute.xlu0 %332
      %336 = vset.pattern.permute.xlu0 0
      %337 = vperm.xlu0 %336, %v299
      %v338 = vpop.permute.xlu0 %337
      %341 = vset.pattern.permute.xlu0 0
      %342 = vperm.xlu0 %341, %v300
      %v343 = vpop.permute.xlu0 %342
      %346 = vset.pattern.permute.xlu0 0
      %347 = vperm.xlu0 %346, %v301
      %v348 = vpop.permute.xlu0 %347
      %351 = vset.pattern.permute.xlu0 0
      %352 = vperm.xlu0 %351, %v302
      %v353 = vpop.permute.xlu0 %352
      %356 = vset.pattern.permute.xlu0 0
      %357 = vperm.xlu0 %356, %v303
      %v358 = vpop.permute.xlu0 %357
      %361 = vset.pattern.permute.xlu0 0
      %362 = vperm.xlu0 %361, %v304
      %v363 = vpop.permute.xlu0 %362
      %366 = vset.pattern.permute.xlu0 0
      %367 = vperm.xlu0 %366, %v305
      %v368 = vpop.permute.xlu0 %367
      %371 = vset.pattern.permute.xlu0 0
      %372 = vperm.xlu0 %371, %v306
      %v373 = vpop.permute.xlu0 %372
      %376 = vset.pattern.permute.xlu0 0
      %377 = vperm.xlu0 %376, %v307
      %v378 = vpop.permute.xlu0 %377
      %381 = vset.pattern.permute.xlu0 0
      %382 = vperm.xlu0 %381, %v308
      %v383 = vpop.permute.xlu0 %382
      %386 = vset.pattern.permute.xlu0 0
      %387 = vperm.xlu0 %386, %v309
      %v388 = vpop.permute.xlu0 %387
      %v422 = vunpack.c.l.b16 %v198
      %v423 = vunpack.c.h.b16 %v198
      %v424 = vunpack.c.l.b16 %v199
      %v425 = vunpack.c.h.b16 %v199
      %v426 = vunpack.c.l.b16 %v200
      %v427 = vunpack.c.h.b16 %v200
      %v428 = vunpack.c.l.b16 %v201
      %v429 = vunpack.c.h.b16 %v201
      %v430 = vunpack.c.l.b16 %v202
      %v431 = vunpack.c.h.b16 %v202
      %v432 = vunpack.c.l.b16 %v203
      %v433 = vunpack.c.h.b16 %v203
      %v434 = vunpack.c.l.b16 %v204
      %v435 = vunpack.c.h.b16 %v204
      %v436 = vunpack.c.l.b16 %v205
      %v437 = vunpack.c.h.b16 %v205
      %v438 = vunpack.c.l.b16 %v206
      %v439 = vunpack.c.h.b16 %v206
      %v440 = vunpack.c.l.b16 %v207
      %v441 = vunpack.c.h.b16 %v207
      %v442 = vunpack.c.l.b16 %v208
      %v443 = vunpack.c.h.b16 %v208
      %v444 = vunpack.c.l.b16 %v209
      %v445 = vunpack.c.h.b16 %v209
      %v446 = vunpack.c.l.b16 %v210
      %v447 = vunpack.c.h.b16 %v210
      %v448 = vunpack.c.l.b16 %v211
      %v449 = vunpack.c.h.b16 %v211
      %v450 = vunpack.c.l.b16 %v212
      %v451 = vunpack.c.h.b16 %v212
      %v452 = vunpack.c.l.b16 %v213
      %v453 = vunpack.c.h.b16 %v213
      %v454 = vunpack.c.l.b16 %v214
      %v455 = vunpack.c.h.b16 %v214
      %v456 = vunpack.c.l.b16 %v215
      %v457 = vunpack.c.h.b16 %v215
      %v458 = vunpack.c.l.b16 %v216
      %v459 = vunpack.c.h.b16 %v216
      %v460 = vunpack.c.l.b16 %v217
      %v461 = vunpack.c.h.b16 %v217
      %v462 = vunpack.c.l.b16 %v218
      %v463 = vunpack.c.h.b16 %v218
      %v464 = vunpack.c.l.b16 %v219
      %v465 = vunpack.c.h.b16 %v219
      %v466 = vunpack.c.l.b16 %v220
      %v467 = vunpack.c.h.b16 %v220
      %v468 = vunpack.c.l.b16 %v221
      %v469 = vunpack.c.h.b16 %v221
      %v470 = vunpack.c.l.b16 %v222
      %v471 = vunpack.c.h.b16 %v222
      %v472 = vunpack.c.l.b16 %v223
      %v473 = vunpack.c.h.b16 %v223
      %v474 = vunpack.c.l.b16 %v224
      %v475 = vunpack.c.h.b16 %v224
      %v476 = vunpack.c.l.b16 %v225
      %v477 = vunpack.c.h.b16 %v225
      %v478 = vunpack.c.l.b16 %v226
      %v479 = vunpack.c.h.b16 %v226
      %v480 = vunpack.c.l.b16 %v227
      %v481 = vunpack.c.h.b16 %v227
      %v482 = vunpack.c.l.b16 %v228
      %v483 = vunpack.c.h.b16 %v228
      %v484 = vunpack.c.l.b16 %v229
      %v485 = vunpack.c.h.b16 %v229
      %v486 = vpack.c.b16 %v426, %v422
      %v487 = vpack.c.b16 %v427, %v423
      %v488 = vpack.c.b16 %v428, %v424
      %v489 = vpack.c.b16 %v429, %v425
      %v490 = vpack.c.b16 %v434, %v430
      %v491 = vpack.c.b16 %v435, %v431
      %v492 = vpack.c.b16 %v436, %v432
      %v493 = vpack.c.b16 %v437, %v433
      %v494 = vpack.c.b16 %v442, %v438
      %v495 = vpack.c.b16 %v443, %v439
      %v496 = vpack.c.b16 %v444, %v440
      %v497 = vpack.c.b16 %v445, %v441
      %v498 = vpack.c.b16 %v450, %v446
      %v499 = vpack.c.b16 %v451, %v447
      %v500 = vpack.c.b16 %v452, %v448
      %v501 = vpack.c.b16 %v453, %v449
      %v502 = vpack.c.b16 %v458, %v454
      %v503 = vpack.c.b16 %v459, %v455
      %v504 = vpack.c.b16 %v460, %v456
      %v505 = vpack.c.b16 %v461, %v457
      %v506 = vpack.c.b16 %v466, %v462
      %v507 = vpack.c.b16 %v467, %v463
      %v508 = vpack.c.b16 %v468, %v464
      %v509 = vpack.c.b16 %v469, %v465
      %v510 = vpack.c.b16 %v474, %v470
      %v511 = vpack.c.b16 %v475, %v471
      %v512 = vpack.c.b16 %v476, %v472
      %v513 = vpack.c.b16 %v477, %v473
      %v514 = vpack.c.b16 %v482, %v478
      %v515 = vpack.c.b16 %v483, %v479
      %v516 = vpack.c.b16 %v484, %v480
      %v517 = vpack.c.b16 %v485, %v481
      %v614 = vunpack.c.l.b16 %v230
      %v615 = vunpack.c.h.b16 %v230
      %v616 = vunpack.c.l.b16 %v231
      %v617 = vunpack.c.h.b16 %v231
      %v618 = vunpack.c.l.b16 %v232
      %v619 = vunpack.c.h.b16 %v232
      %v620 = vunpack.c.l.b16 %v233
      %v621 = vunpack.c.h.b16 %v233
      %v622 = vunpack.c.l.b16 %v234
      %v623 = vunpack.c.h.b16 %v234
      %v624 = vunpack.c.l.b16 %v235
      %v625 = vunpack.c.h.b16 %v235
      %v626 = vunpack.c.l.b16 %v236
      %v627 = vunpack.c.h.b16 %v236
      %v628 = vunpack.c.l.b16 %v237
      %v629 = vunpack.c.h.b16 %v237
      %v630 = vunpack.c.l.b16 %v238
      %v631 = vunpack.c.h.b16 %v238
      %v632 = vunpack.c.l.b16 %v239
      %v633 = vunpack.c.h.b16 %v239
      %v634 = vunpack.c.l.b16 %v240
      %v635 = vunpack.c.h.b16 %v240
      %v636 = vunpack.c.l.b16 %v241
      %v637 = vunpack.c.h.b16 %v241
      %v638 = vunpack.c.l.b16 %v242
      %v639 = vunpack.c.h.b16 %v242
      %v640 = vunpack.c.l.b16 %v243
      %v641 = vunpack.c.h.b16 %v243
      %v642 = vunpack.c.l.b16 %v244
      %v643 = vunpack.c.h.b16 %v244
      %v644 = vunpack.c.l.b16 %v245
      %v645 = vunpack.c.h.b16 %v245
      %v646 = vunpack.c.l.b16 %v246
      %v647 = vunpack.c.h.b16 %v246
      %v648 = vunpack.c.l.b16 %v247
      %v649 = vunpack.c.h.b16 %v247
      %v650 = vunpack.c.l.b16 %v248
      %v651 = vunpack.c.h.b16 %v248
      %v652 = vunpack.c.l.b16 %v249
      %v653 = vunpack.c.h.b16 %v249
      %v654 = vunpack.c.l.b16 %v250
      %v655 = vunpack.c.h.b16 %v250
      %v656 = vunpack.c.l.b16 %v251
      %v657 = vunpack.c.h.b16 %v251
      %v658 = vunpack.c.l.b16 %v252
      %v659 = vunpack.c.h.b16 %v252
      %v660 = vunpack.c.l.b16 %v253
      %v661 = vunpack.c.h.b16 %v253
      %v662 = vunpack.c.l.b16 %v254
      %v663 = vunpack.c.h.b16 %v254
      %v664 = vunpack.c.l.b16 %v255
      %v665 = vunpack.c.h.b16 %v255
      %v666 = vunpack.c.l.b16 %v256
      %v667 = vunpack.c.h.b16 %v256
      %v668 = vunpack.c.l.b16 %v257
      %v669 = vunpack.c.h.b16 %v257
      %v670 = vunpack.c.l.b16 %v258
      %v671 = vunpack.c.h.b16 %v258
      %v672 = vunpack.c.l.b16 %v259
      %v673 = vunpack.c.h.b16 %v259
      %v674 = vunpack.c.l.b16 %v260
      %v675 = vunpack.c.h.b16 %v260
      %v676 = vunpack.c.l.b16 %v261
      %v677 = vunpack.c.h.b16 %v261
      %v678 = vunpack.c.l.b16 %v262
      %v679 = vunpack.c.h.b16 %v262
      %v680 = vunpack.c.l.b16 %v263
      %v681 = vunpack.c.h.b16 %v263
      %v682 = vunpack.c.l.b16 %v264
      %v683 = vunpack.c.h.b16 %v264
      %v684 = vunpack.c.l.b16 %v265
      %v685 = vunpack.c.h.b16 %v265
      %v686 = vunpack.c.l.b16 %v266
      %v687 = vunpack.c.h.b16 %v266
      %v688 = vunpack.c.l.b16 %v267
      %v689 = vunpack.c.h.b16 %v267
      %v690 = vunpack.c.l.b16 %v268
      %v691 = vunpack.c.h.b16 %v268
      %v692 = vunpack.c.l.b16 %v269
      %v693 = vunpack.c.h.b16 %v269
      %v694 = vunpack.c.l.b16 %v270
      %v695 = vunpack.c.h.b16 %v270
      %v696 = vunpack.c.l.b16 %v271
      %v697 = vunpack.c.h.b16 %v271
      %v698 = vunpack.c.l.b16 %v272
      %v699 = vunpack.c.h.b16 %v272
      %v700 = vunpack.c.l.b16 %v273
      %v701 = vunpack.c.h.b16 %v273
      %v702 = vunpack.c.l.b16 %v274
      %v703 = vunpack.c.h.b16 %v274
      %v704 = vunpack.c.l.b16 %v275
      %v705 = vunpack.c.h.b16 %v275
      %v706 = vunpack.c.l.b16 %v276
      %v707 = vunpack.c.h.b16 %v276
      %v708 = vunpack.c.l.b16 %v277
      %v709 = vunpack.c.h.b16 %v277
      %v710 = vunpack.c.l.b16 %v278
      %v711 = vunpack.c.h.b16 %v278
      %v712 = vunpack.c.l.b16 %v279
      %v713 = vunpack.c.h.b16 %v279
      %v714 = vunpack.c.l.b16 %v280
      %v715 = vunpack.c.h.b16 %v280
      %v716 = vunpack.c.l.b16 %v281
      %v717 = vunpack.c.h.b16 %v281
      %v718 = vunpack.c.l.b16 %v282
      %v719 = vunpack.c.h.b16 %v282
      %v720 = vunpack.c.l.b16 %v283
      %v721 = vunpack.c.h.b16 %v283
      %v722 = vunpack.c.l.b16 %v284
      %v723 = vunpack.c.h.b16 %v284
      %v724 = vunpack.c.l.b16 %v285
      %v725 = vunpack.c.h.b16 %v285
      %v726 = vunpack.c.l.b16 %v286
      %v727 = vunpack.c.h.b16 %v286
      %v728 = vunpack.c.l.b16 %v287
      %v729 = vunpack.c.h.b16 %v287
      %v730 = vunpack.c.l.b16 %v288
      %v731 = vunpack.c.h.b16 %v288
      %v732 = vunpack.c.l.b16 %v289
      %v733 = vunpack.c.h.b16 %v289
      %v734 = vunpack.c.l.b16 %v290
      %v735 = vunpack.c.h.b16 %v290
      %v736 = vunpack.c.l.b16 %v291
      %v737 = vunpack.c.h.b16 %v291
      %v738 = vunpack.c.l.b16 %v292
      %v739 = vunpack.c.h.b16 %v292
      %v740 = vunpack.c.l.b16 %v293
      %v741 = vunpack.c.h.b16 %v293
      %v742 = vpack.c.b16 %v616, %v614
      %v743 = vpack.c.b16 %v617, %v615
      %v744 = vpack.c.b16 %v620, %v618
      %v745 = vpack.c.b16 %v621, %v619
      %v746 = vpack.c.b16 %v624, %v622
      %v747 = vpack.c.b16 %v625, %v623
      %v748 = vpack.c.b16 %v628, %v626
      %v749 = vpack.c.b16 %v629, %v627
      %v750 = vpack.c.b16 %v632, %v630
      %v751 = vpack.c.b16 %v633, %v631
      %v752 = vpack.c.b16 %v636, %v634
      %v753 = vpack.c.b16 %v637, %v635
      %v754 = vpack.c.b16 %v640, %v638
      %v755 = vpack.c.b16 %v641, %v639
      %v756 = vpack.c.b16 %v644, %v642
      %v757 = vpack.c.b16 %v645, %v643
      %v758 = vpack.c.b16 %v648, %v646
      %v759 = vpack.c.b16 %v649, %v647
      %v760 = vpack.c.b16 %v652, %v650
      %v761 = vpack.c.b16 %v653, %v651
      %v762 = vpack.c.b16 %v656, %v654
      %v763 = vpack.c.b16 %v657, %v655
      %v764 = vpack.c.b16 %v660, %v658
      %v765 = vpack.c.b16 %v661, %v659
      %v766 = vpack.c.b16 %v664, %v662
      %v767 = vpack.c.b16 %v665, %v663
      %v768 = vpack.c.b16 %v668, %v666
      %v769 = vpack.c.b16 %v669, %v667
      %v770 = vpack.c.b16 %v672, %v670
      %v771 = vpack.c.b16 %v673, %v671
      %v772 = vpack.c.b16 %v676, %v674
      %v773 = vpack.c.b16 %v677, %v675
      %v774 = vpack.c.b16 %v680, %v678
      %v775 = vpack.c.b16 %v681, %v679
      %v776 = vpack.c.b16 %v684, %v682
      %v777 = vpack.c.b16 %v685, %v683
      %v778 = vpack.c.b16 %v688, %v686
      %v779 = vpack.c.b16 %v689, %v687
      %v780 = vpack.c.b16 %v692, %v690
      %v781 = vpack.c.b16 %v693, %v691
      %v782 = vpack.c.b16 %v696, %v694
      %v783 = vpack.c.b16 %v697, %v695
      %v784 = vpack.c.b16 %v700, %v698
      %v785 = vpack.c.b16 %v701, %v699
      %v786 = vpack.c.b16 %v704, %v702
      %v787 = vpack.c.b16 %v705, %v703
      %v788 = vpack.c.b16 %v708, %v706
      %v789 = vpack.c.b16 %v709, %v707
      %v790 = vpack.c.b16 %v712, %v710
      %v791 = vpack.c.b16 %v713, %v711
      %v792 = vpack.c.b16 %v716, %v714
      %v793 = vpack.c.b16 %v717, %v715
      %v794 = vpack.c.b16 %v720, %v718
      %v795 = vpack.c.b16 %v721, %v719
      %v796 = vpack.c.b16 %v724, %v722
      %v797 = vpack.c.b16 %v725, %v723
      %v798 = vpack.c.b16 %v728, %v726
      %v799 = vpack.c.b16 %v729, %v727
      %v800 = vpack.c.b16 %v732, %v730
      %v801 = vpack.c.b16 %v733, %v731
      %v802 = vpack.c.b16 %v736, %v734
      %v803 = vpack.c.b16 %v737, %v735
      %v804 = vpack.c.b16 %v740, %v738
      %v805 = vpack.c.b16 %v741, %v739
      %870 = vmatprep.subr.bf16.mxu0 %v743
      %871 = vmatpush1.bf16.msra.mxu0 %v742
      %872 = vmatprep.subr.bf16.mxu0 %v745
      %873 = vmatpush1.bf16.msra.mxu0 %v744
      %874 = vmatprep.subr.bf16.mxu0 %v747
      %875 = vmatpush1.bf16.msra.mxu0 %v746
      %876 = vmatprep.subr.bf16.mxu0 %v749
      %877 = vmatpush1.bf16.msra.mxu0 %v748
      %878 = vmatprep.subr.bf16.mxu0 %v751
      %879 = vmatpush1.bf16.msra.mxu0 %v750
      %880 = vmatprep.subr.bf16.mxu0 %v753
      %881 = vmatpush1.bf16.msra.mxu0 %v752
      %882 = vmatprep.subr.bf16.mxu0 %v755
      %883 = vmatpush1.bf16.msra.mxu0 %v754
      %884 = vmatprep.subr.bf16.mxu0 %v757
      %885 = vmatpush1.bf16.msra.mxu0 %v756
      %886 = vmatprep.subr.bf16.mxu0 %v759
      %887 = vmatpush1.bf16.msra.mxu0 %v758
      %888 = vmatprep.subr.bf16.mxu0 %v761
      %889 = vmatpush1.bf16.msra.mxu0 %v760
      %890 = vmatprep.subr.bf16.mxu0 %v763
      %891 = vmatpush1.bf16.msra.mxu0 %v762
      %892 = vmatprep.subr.bf16.mxu0 %v765
      %893 = vmatpush1.bf16.msra.mxu0 %v764
      %894 = vmatprep.subr.bf16.mxu0 %v767
      %895 = vmatpush1.bf16.msra.mxu0 %v766
      %896 = vmatprep.subr.bf16.mxu0 %v769
      %897 = vmatpush1.bf16.msra.mxu0 %v768
      %898 = vmatprep.subr.bf16.mxu0 %v771
      %899 = vmatpush1.bf16.msra.mxu0 %v770
      %900 = vmatprep.subr.bf16.mxu0 %v773
      %901 = vmatpush1.bf16.msra.mxu0 %v772
      %902 = vmatprep.mubr.bf16.mxu0 %v487
      %903 = vmatmul.mubr.bf16.gmra.mrb[0].mxu0 %v486
      %v904 = vpop.f32.mrb[0].mxu0
      %v905 = vadd.f32 %v313, %v904
      %v906 = vpop.f32.mrb[0].mxu0
      %v907 = vadd.f32 %v313, %v906
      %v908 = vpop.f32.mrb[0].mxu0
      %v909 = vadd.f32 %v318, %v908
      %v910 = vpop.f32.mrb[0].mxu0
      %v911 = vadd.f32 %v318, %v910
      %912 = vmatprep.mubr.bf16.mxu0 %v491
      %913 = vmatmul.mubr.bf16.gmra.mrb[0].mxu0 %v490
      %v914 = vpop.f32.mrb[0].mxu0
      %v915 = vadd.f32 %v323, %v914
      %v916 = vpop.f32.mrb[0].mxu0
      %v917 = vadd.f32 %v323, %v916
      %v918 = vpop.f32.mrb[0].mxu0
      %v919 = vadd.f32 %v328, %v918
      %v920 = vpop.f32.mrb[0].mxu0
      %v921 = vadd.f32 %v328, %v920
      %922 = vmatprep.mubr.bf16.mxu0 %v495
      %923 = vmatmul.mubr.bf16.gmra.mrb[0].mxu0 %v494
      %v924 = vpop.f32.mrb[0].mxu0
      %v925 = vadd.f32 %v333, %v924
      %v926 = vpop.f32.mrb[0].mxu0
      %v927 = vadd.f32 %v333, %v926
      %v928 = vpop.f32.mrb[0].mxu0
      %v929 = vadd.f32 %v338, %v928
      %v930 = vpop.f32.mrb[0].mxu0
      %v931 = vadd.f32 %v338, %v930
      %932 = vmatprep.mubr.bf16.mxu0 %v499
      %933 = vmatmul.mubr.bf16.gmra.mrb[0].mxu0 %v498
      %v934 = vpop.f32.mrb[0].mxu0
      %v935 = vadd.f32 %v343, %v934
      %v936 = vpop.f32.mrb[0].mxu0
      %v937 = vadd.f32 %v343, %v936
      %v938 = vpop.f32.mrb[0].mxu0
      %v939 = vadd.f32 %v348, %v938
      %v940 = vpop.f32.mrb[0].mxu0
      %v941 = vadd.f32 %v348, %v940
      %942 = vmatprep.mubr.bf16.mxu0 %v503
      %943 = vmatmul.mubr.bf16.gmra.mrb[0].mxu0 %v502
      %v944 = vpop.f32.mrb[0].mxu0
      %v945 = vadd.f32 %v353, %v944
      %v946 = vpop.f32.mrb[0].mxu0
      %v947 = vadd.f32 %v353, %v946
      %v948 = vpop.f32.mrb[0].mxu0
      %v949 = vadd.f32 %v358, %v948
      %v950 = vpop.f32.mrb[0].mxu0
      %v951 = vadd.f32 %v358, %v950
      %952 = vmatprep.mubr.bf16.mxu0 %v507
      %953 = vmatmul.mubr.bf16.gmra.mrb[0].mxu0 %v506
      %v954 = vpop.f32.mrb[0].mxu0
      %v955 = vadd.f32 %v363, %v954
      %v956 = vpop.f32.mrb[0].mxu0
      %v957 = vadd.f32 %v363, %v956
      %v958 = vpop.f32.mrb[0].mxu0
      %v959 = vadd.f32 %v368, %v958
      %v960 = vpop.f32.mrb[0].mxu0
      %v961 = vadd.f32 %v368, %v960
      %962 = vmatprep.mubr.bf16.mxu0 %v511
      %963 = vmatmul.mubr.bf16.gmra.mrb[0].mxu0 %v510
      %v964 = vpop.f32.mrb[0].mxu0
      %v965 = vadd.f32 %v373, %v964
      %v966 = vpop.f32.mrb[0].mxu0
      %v967 = vadd.f32 %v373, %v966
      %v968 = vpop.f32.mrb[0].mxu0
      %v969 = vadd.f32 %v378, %v968
      %v970 = vpop.f32.mrb[0].mxu0
      %v971 = vadd.f32 %v378, %v970
      %972 = vmatprep.mubr.bf16.mxu0 %v515
      %973 = vmatmul.mubr.bf16.gmra.mrb[0].mxu0 %v514
      %v974 = vpop.f32.mrb[0].mxu0
      %v975 = vadd.f32 %v383, %v974
      %v976 = vpop.f32.mrb[0].mxu0
      %v977 = vadd.f32 %v383, %v976
      %v978 = vpop.f32.mrb[0].mxu0
      %v979 = vadd.f32 %v388, %v978
      %v980 = vpop.f32.mrb[0].mxu0
      %v981 = vadd.f32 %v388, %v980
      %982 = vdwg.mxu0
      %983 = vmatprep.subr.bf16.mxu0 %v775
      %984 = vmatpush1.bf16.msra.mxu0 %v774
      %985 = vmatprep.subr.bf16.mxu0 %v777
      %986 = vmatpush1.bf16.msra.mxu0 %v776
      %987 = vmatprep.subr.bf16.mxu0 %v779
      %988 = vmatpush1.bf16.msra.mxu0 %v778
      %989 = vmatprep.subr.bf16.mxu0 %v781
      %990 = vmatpush1.bf16.msra.mxu0 %v780
      %991 = vmatprep.subr.bf16.mxu0 %v783
      %992 = vmatpush1.bf16.msra.mxu0 %v782
      %993 = vmatprep.subr.bf16.mxu0 %v785
      %994 = vmatpush1.bf16.msra.mxu0 %v784
      %995 = vmatprep.subr.bf16.mxu0 %v787
      %996 = vmatpush1.bf16.msra.mxu0 %v786
      %997 = vmatprep.subr.bf16.mxu0 %v789
      %998 = vmatpush1.bf16.msra.mxu0 %v788
      %999 = vmatprep.subr.bf16.mxu0 %v791
      %1000 = vmatpush1.bf16.msra.mxu0 %v790
      %1001 = vmatprep.subr.bf16.mxu0 %v793
      %1002 = vmatpush1.bf16.msra.mxu0 %v792
      %1003 = vmatprep.subr.bf16.mxu0 %v795
      %1004 = vmatpush1.bf16.msra.mxu0 %v794
      %1005 = vmatprep.subr.bf16.mxu0 %v797
      %1006 = vmatpush1.bf16.msra.mxu0 %v796
      %1007 = vmatprep.subr.bf16.mxu0 %v799
      %1008 = vmatpush1.bf16.msra.mxu0 %v798
      %1009 = vmatprep.subr.bf16.mxu0 %v801
      %1010 = vmatpush1.bf16.msra.mxu0 %v800
      %1011 = vmatprep.subr.bf16.mxu0 %v803
      %1012 = vmatpush1.bf16.msra.mxu0 %v802
      %1013 = vmatprep.subr.bf16.mxu0 %v805
      %1014 = vmatpush1.bf16.msra.mxu0 %v804
      %1015 = vmatprep.mubr.bf16.mxu0 %v489
      %1016 = vmatmul.mubr.bf16.gmra.mrb[0].mxu0 %v488
      %v1017 = vpop.f32.mrb[0].mxu0
      %v1018 = vadd.f32 %v905, %v1017
      %v1019 = vpop.f32.mrb[0].mxu0
      %v1020 = vadd.f32 %v907, %v1019
      %v1021 = vpop.f32.mrb[0].mxu0
      %v1022 = vadd.f32 %v909, %v1021
      %v1023 = vpop.f32.mrb[0].mxu0
      %v1024 = vadd.f32 %v911, %v1023
      %1025 = vmatprep.mubr.bf16.mxu0 %v493
      %1026 = vmatmul.mubr.bf16.gmra.mrb[0].mxu0 %v492
      %v1027 = vpop.f32.mrb[0].mxu0
      %v1028 = vadd.f32 %v915, %v1027
      %v1029 = vpop.f32.mrb[0].mxu0
      %v1030 = vadd.f32 %v917, %v1029
      %v1031 = vpop.f32.mrb[0].mxu0
      %v1032 = vadd.f32 %v919, %v1031
      %v1033 = vpop.f32.mrb[0].mxu0
      %v1034 = vadd.f32 %v921, %v1033
      %1035 = vmatprep.mubr.bf16.mxu0 %v497
      %1036 = vmatmul.mubr.bf16.gmra.mrb[0].mxu0 %v496
      %v1037 = vpop.f32.mrb[0].mxu0
      %v1038 = vadd.f32 %v925, %v1037
      %v1039 = vpop.f32.mrb[0].mxu0
      %v1040 = vadd.f32 %v927, %v1039
      %v1041 = vpop.f32.mrb[0].mxu0
      %v1042 = vadd.f32 %v929, %v1041
      %v1043 = vpop.f32.mrb[0].mxu0
      %v1044 = vadd.f32 %v931, %v1043
      %1045 = vmatprep.mubr.bf16.mxu0 %v501
      %1046 = vmatmul.mubr.bf16.gmra.mrb[0].mxu0 %v500
      %v1047 = vpop.f32.mrb[0].mxu0
      %v1048 = vadd.f32 %v935, %v1047
      %v1049 = vpop.f32.mrb[0].mxu0
      %v1050 = vadd.f32 %v937, %v1049
      %v1051 = vpop.f32.mrb[0].mxu0
      %v1052 = vadd.f32 %v939, %v1051
      %v1053 = vpop.f32.mrb[0].mxu0
      %v1054 = vadd.f32 %v941, %v1053
      %1055 = vmatprep.mubr.bf16.mxu0 %v505
      %1056 = vmatmul.mubr.bf16.gmra.mrb[0].mxu0 %v504
      %v1057 = vpop.f32.mrb[0].mxu0
      %v1058 = vadd.f32 %v945, %v1057
      %v1059 = vpop.f32.mrb[0].mxu0
      %v1060 = vadd.f32 %v947, %v1059
      %v1061 = vpop.f32.mrb[0].mxu0
      %v1062 = vadd.f32 %v949, %v1061
      %v1063 = vpop.f32.mrb[0].mxu0
      %v1064 = vadd.f32 %v951, %v1063
      %1065 = vmatprep.mubr.bf16.mxu0 %v509
      %1066 = vmatmul.mubr.bf16.gmra.mrb[0].mxu0 %v508
      %v1067 = vpop.f32.mrb[0].mxu0
      %v1068 = vadd.f32 %v955, %v1067
      %v1069 = vpop.f32.mrb[0].mxu0
      %v1070 = vadd.f32 %v957, %v1069
      %v1071 = vpop.f32.mrb[0].mxu0
      %v1072 = vadd.f32 %v959, %v1071
      %v1073 = vpop.f32.mrb[0].mxu0
      %v1074 = vadd.f32 %v961, %v1073
      %1075 = vmatprep.mubr.bf16.mxu0 %v513
      %1076 = vmatmul.mubr.bf16.gmra.mrb[0].mxu0 %v512
      %v1077 = vpop.f32.mrb[0].mxu0
      %v1078 = vadd.f32 %v965, %v1077
      %v1079 = vpop.f32.mrb[0].mxu0
      %v1080 = vadd.f32 %v967, %v1079
      %v1081 = vpop.f32.mrb[0].mxu0
      %v1082 = vadd.f32 %v969, %v1081
      %v1083 = vpop.f32.mrb[0].mxu0
      %v1084 = vadd.f32 %v971, %v1083
      %1085 = vmatprep.mubr.bf16.mxu0 %v517
      %1086 = vmatmul.mubr.bf16.gmra.mrb[0].mxu0 %v516
      %v1087 = vpop.f32.mrb[0].mxu0
      %v1088 = vadd.f32 %v975, %v1087
      %v1089 = vpop.f32.mrb[0].mxu0
      %v1090 = vadd.f32 %v977, %v1089
      %v1091 = vpop.f32.mrb[0].mxu0
      %v1092 = vadd.f32 %v979, %v1091
      %v1093 = vpop.f32.mrb[0].mxu0
      %v1094 = vadd.f32 %v981, %v1093
      %1095 = vdwg.mxu0
      %v1096 = vpack.c.bf16 %v1022, %v1018
      %v1097 = vpack.c.bf16 %v1024, %v1020
      %v1098 = vpack.c.bf16 %v1032, %v1028
      %v1099 = vpack.c.bf16 %v1034, %v1030
      %v1100 = vpack.c.bf16 %v1042, %v1038
      %v1101 = vpack.c.bf16 %v1044, %v1040
      %v1102 = vpack.c.bf16 %v1052, %v1048
      %v1103 = vpack.c.bf16 %v1054, %v1050
      %v1104 = vpack.c.bf16 %v1062, %v1058
      %v1105 = vpack.c.bf16 %v1064, %v1060
      %v1106 = vpack.c.bf16 %v1072, %v1068
      %v1107 = vpack.c.bf16 %v1074, %v1070
      %v1108 = vpack.c.bf16 %v1082, %v1078
      %v1109 = vpack.c.bf16 %v1084, %v1080
      %v1110 = vpack.c.bf16 %v1092, %v1088
      %v1111 = vpack.c.bf16 %v1094, %v1090
      %v1112 = vld [vmem:[%s3] sm:$0xff]
      %v1113 = vld [vmem:[%s3 + $0x8] sm:$0xff]
      %v1114 = vld [vmem:[%s3 + $0x10] sm:$0xff]
      %v1115 = vld [vmem:[%s3 + $0x18] sm:$0xff]
      %v1116 = vld [vmem:[%s3 + $0x20] sm:$0xff]
      %v1117 = vld [vmem:[%s3 + $0x28] sm:$0xff]
      %v1118 = vld [vmem:[%s3 + $0x30] sm:$0xff]
      %v1119 = vld [vmem:[%s3 + $0x38] sm:$0xff]
      %v1120 = vld [vmem:[%s3 + $0x40] sm:$0xff]
      %v1121 = vld [vmem:[%s3 + $0x48] sm:$0xff]
      %v1122 = vld [vmem:[%s3 + $0x50] sm:$0xff]
      %v1123 = vld [vmem:[%s3 + $0x58] sm:$0xff]
      %v1124 = vld [vmem:[%s3 + $0x60] sm:$0xff]
      %v1125 = vld [vmem:[%s3 + $0x68] sm:$0xff]
      %v1126 = vld [vmem:[%s3 + $0x70] sm:$0xff]
      %v1127 = vld [vmem:[%s3 + $0x78] sm:$0xff]
      %v1128 = vld [vmem:[%s3 + $0x80] sm:$0xff]
      %v1129 = vld [vmem:[%s3 + $0x88] sm:$0xff]
      %v1130 = vld [vmem:[%s3 + $0x90] sm:$0xff]
      %v1131 = vld [vmem:[%s3 + $0x98] sm:$0xff]
      %v1132 = vld [vmem:[%s3 + $0xa0] sm:$0xff]
      %v1133 = vld [vmem:[%s3 + $0xa8] sm:$0xff]
      %v1134 = vld [vmem:[%s3 + $0xb0] sm:$0xff]
      %v1135 = vld [vmem:[%s3 + $0xb8] sm:$0xff]
      %v1136 = vld [vmem:[%s3 + $0xc0] sm:$0xff]
      %v1137 = vld [vmem:[%s3 + $0xc8] sm:$0xff]
      %v1138 = vld [vmem:[%s3 + $0xd0] sm:$0xff]
      %v1139 = vld [vmem:[%s3 + $0xd8] sm:$0xff]
      %v1140 = vld [vmem:[%s3 + $0xe0] sm:$0xff]
      %v1141 = vld [vmem:[%s3 + $0xe8] sm:$0xff]
      %v1142 = vld [vmem:[%s3 + $0xf0] sm:$0xff]
      %v1143 = vld [vmem:[%s3 + $0xf8] sm:$0xff]
      %v1144 = vld [vmem:[%s3 + $0x100] sm:$0xff]
      %v1145 = vld [vmem:[%s3 + $0x108] sm:$0xff]
      %v1146 = vld [vmem:[%s3 + $0x110] sm:$0xff]
      %v1147 = vld [vmem:[%s3 + $0x118] sm:$0xff]
      %v1148 = vld [vmem:[%s3 + $0x120] sm:$0xff]
      %v1149 = vld [vmem:[%s3 + $0x128] sm:$0xff]
      %v1150 = vld [vmem:[%s3 + $0x130] sm:$0xff]
      %v1151 = vld [vmem:[%s3 + $0x138] sm:$0xff]
      %v1152 = vld [vmem:[%s3 + $0x140] sm:$0xff]
      %v1153 = vld [vmem:[%s3 + $0x148] sm:$0xff]
      %v1154 = vld [vmem:[%s3 + $0x150] sm:$0xff]
      %v1155 = vld [vmem:[%s3 + $0x158] sm:$0xff]
      %v1156 = vld [vmem:[%s3 + $0x160] sm:$0xff]
      %v1157 = vld [vmem:[%s3 + $0x168] sm:$0xff]
      %v1158 = vld [vmem:[%s3 + $0x170] sm:$0xff]
      %v1159 = vld [vmem:[%s3 + $0x178] sm:$0xff]
      %v1160 = vld [vmem:[%s3 + $0x180] sm:$0xff]
      %v1161 = vld [vmem:[%s3 + $0x188] sm:$0xff]
      %v1162 = vld [vmem:[%s3 + $0x190] sm:$0xff]
      %v1163 = vld [vmem:[%s3 + $0x198] sm:$0xff]
      %v1164 = vld [vmem:[%s3 + $0x1a0] sm:$0xff]
      %v1165 = vld [vmem:[%s3 + $0x1a8] sm:$0xff]
      %v1166 = vld [vmem:[%s3 + $0x1b0] sm:$0xff]
      %v1167 = vld [vmem:[%s3 + $0x1b8] sm:$0xff]
      %v1168 = vld [vmem:[%s3 + $0x1c0] sm:$0xff]
      %v1169 = vld [vmem:[%s3 + $0x1c8] sm:$0xff]
      %v1170 = vld [vmem:[%s3 + $0x1d0] sm:$0xff]
      %v1171 = vld [vmem:[%s3 + $0x1d8] sm:$0xff]
      %v1172 = vld [vmem:[%s3 + $0x1e0] sm:$0xff]
      %v1173 = vld [vmem:[%s3 + $0x1e8] sm:$0xff]
      %v1174 = vld [vmem:[%s3 + $0x1f0] sm:$0xff]
      %v1175 = vld [vmem:[%s3 + $0x1f8] sm:$0xff]
      %v1176 = vld [vmem:[%s3 + $0x200] sm:$0xff]
      %v1177 = vld [vmem:[%s3 + $0x208] sm:$0xff]
      %v1178 = vld [vmem:[%s3 + $0x210] sm:$0xff]
      %v1179 = vld [vmem:[%s3 + $0x218] sm:$0xff]
      %v1180 = vld [vmem:[%s3 + $0x220] sm:$0xff]
      %v1181 = vld [vmem:[%s3 + $0x228] sm:$0xff]
      %v1182 = vld [vmem:[%s3 + $0x230] sm:$0xff]
      %v1183 = vld [vmem:[%s3 + $0x238] sm:$0xff]
      %v1184 = vld [vmem:[%s3 + $0x240] sm:$0xff]
      %v1185 = vld [vmem:[%s3 + $0x248] sm:$0xff]
      %v1186 = vld [vmem:[%s3 + $0x250] sm:$0xff]
      %v1187 = vld [vmem:[%s3 + $0x258] sm:$0xff]
      %v1188 = vld [vmem:[%s3 + $0x260] sm:$0xff]
      %v1189 = vld [vmem:[%s3 + $0x268] sm:$0xff]
      %v1190 = vld [vmem:[%s3 + $0x270] sm:$0xff]
      %v1191 = vld [vmem:[%s3 + $0x278] sm:$0xff]
      %v1192 = vld [vmem:[%s3 + $0x280] sm:$0xff]
      %v1193 = vld [vmem:[%s3 + $0x288] sm:$0xff]
      %v1194 = vld [vmem:[%s3 + $0x290] sm:$0xff]
      %v1195 = vld [vmem:[%s3 + $0x298] sm:$0xff]
      %v1196 = vld [vmem:[%s3 + $0x2a0] sm:$0xff]
      %v1197 = vld [vmem:[%s3 + $0x2a8] sm:$0xff]
      %v1198 = vld [vmem:[%s3 + $0x2b0] sm:$0xff]
      %v1199 = vld [vmem:[%s3 + $0x2b8] sm:$0xff]
      %v1200 = vld [vmem:[%s3 + $0x2c0] sm:$0xff]
      %v1201 = vld [vmem:[%s3 + $0x2c8] sm:$0xff]
      %v1202 = vld [vmem:[%s3 + $0x2d0] sm:$0xff]
      %v1203 = vld [vmem:[%s3 + $0x2d8] sm:$0xff]
      %v1204 = vld [vmem:[%s3 + $0x2e0] sm:$0xff]
      %v1205 = vld [vmem:[%s3 + $0x2e8] sm:$0xff]
      %v1206 = vld [vmem:[%s3 + $0x2f0] sm:$0xff]
      %v1207 = vld [vmem:[%s3 + $0x2f8] sm:$0xff]
      %v1208 = vld [vmem:[%s3 + $0x300] sm:$0xff]
      %v1209 = vld [vmem:[%s3 + $0x308] sm:$0xff]
      %v1210 = vld [vmem:[%s3 + $0x310] sm:$0xff]
      %v1211 = vld [vmem:[%s3 + $0x318] sm:$0xff]
      %v1212 = vld [vmem:[%s3 + $0x320] sm:$0xff]
      %v1213 = vld [vmem:[%s3 + $0x328] sm:$0xff]
      %v1214 = vld [vmem:[%s3 + $0x330] sm:$0xff]
      %v1215 = vld [vmem:[%s3 + $0x338] sm:$0xff]
      %v1216 = vld [vmem:[%s3 + $0x340] sm:$0xff]
      %v1217 = vld [vmem:[%s3 + $0x348] sm:$0xff]
      %v1218 = vld [vmem:[%s3 + $0x350] sm:$0xff]
      %v1219 = vld [vmem:[%s3 + $0x358] sm:$0xff]
      %v1220 = vld [vmem:[%s3 + $0x360] sm:$0xff]
      %v1221 = vld [vmem:[%s3 + $0x368] sm:$0xff]
      %v1222 = vld [vmem:[%s3 + $0x370] sm:$0xff]
      %v1223 = vld [vmem:[%s3 + $0x378] sm:$0xff]
      %v1224 = vld [vmem:[%s3 + $0x380] sm:$0xff]
      %v1225 = vld [vmem:[%s3 + $0x388] sm:$0xff]
      %v1226 = vld [vmem:[%s3 + $0x390] sm:$0xff]
      %v1227 = vld [vmem:[%s3 + $0x398] sm:$0xff]
      %v1228 = vld [vmem:[%s3 + $0x3a0] sm:$0xff]
      %v1229 = vld [vmem:[%s3 + $0x3a8] sm:$0xff]
      %v1230 = vld [vmem:[%s3 + $0x3b0] sm:$0xff]
      %v1231 = vld [vmem:[%s3 + $0x3b8] sm:$0xff]
      %v1232 = vld [vmem:[%s3 + $0x3c0] sm:$0xff]
      %v1233 = vld [vmem:[%s3 + $0x3c8] sm:$0xff]
      %v1234 = vld [vmem:[%s3 + $0x3d0] sm:$0xff]
      %v1235 = vld [vmem:[%s3 + $0x3d8] sm:$0xff]
      %v1236 = vld [vmem:[%s3 + $0x3e0] sm:$0xff]
      %v1237 = vld [vmem:[%s3 + $0x3e8] sm:$0xff]
      %v1238 = vld [vmem:[%s3 + $0x3f0] sm:$0xff]
      %v1239 = vld [vmem:[%s3 + $0x3f8] sm:$0xff]
      %v1368 = vunpack.c.l.b16 %v1112
      %v1369 = vunpack.c.h.b16 %v1112
      %v1370 = vunpack.c.l.b16 %v1113
      %v1371 = vunpack.c.h.b16 %v1113
      %v1372 = vunpack.c.l.b16 %v1114
      %v1373 = vunpack.c.h.b16 %v1114
      %v1374 = vunpack.c.l.b16 %v1115
      %v1375 = vunpack.c.h.b16 %v1115
      %v1376 = vunpack.c.l.b16 %v1116
      %v1377 = vunpack.c.h.b16 %v1116
      %v1378 = vunpack.c.l.b16 %v1117
      %v1379 = vunpack.c.h.b16 %v1117
      %v1380 = vunpack.c.l.b16 %v1118
      %v1381 = vunpack.c.h.b16 %v1118
      %v1382 = vunpack.c.l.b16 %v1119
      %v1383 = vunpack.c.h.b16 %v1119
      %v1384 = vunpack.c.l.b16 %v1120
      %v1385 = vunpack.c.h.b16 %v1120
      %v1386 = vunpack.c.l.b16 %v1121
      %v1387 = vunpack.c.h.b16 %v1121
      %v1388 = vunpack.c.l.b16 %v1122
      %v1389 = vunpack.c.h.b16 %v1122
      %v1390 = vunpack.c.l.b16 %v1123
      %v1391 = vunpack.c.h.b16 %v1123
      %v1392 = vunpack.c.l.b16 %v1124
      %v1393 = vunpack.c.h.b16 %v1124
      %v1394 = vunpack.c.l.b16 %v1125
      %v1395 = vunpack.c.h.b16 %v1125
      %v1396 = vunpack.c.l.b16 %v1126
      %v1397 = vunpack.c.h.b16 %v1126
      %v1398 = vunpack.c.l.b16 %v1127
      %v1399 = vunpack.c.h.b16 %v1127
      %v1400 = vunpack.c.l.b16 %v1128
      %v1401 = vunpack.c.h.b16 %v1128
      %v1402 = vunpack.c.l.b16 %v1129
      %v1403 = vunpack.c.h.b16 %v1129
      %v1404 = vunpack.c.l.b16 %v1130
      %v1405 = vunpack.c.h.b16 %v1130
      %v1406 = vunpack.c.l.b16 %v1131
      %v1407 = vunpack.c.h.b16 %v1131
      %v1408 = vunpack.c.l.b16 %v1132
      %v1409 = vunpack.c.h.b16 %v1132
      %v1410 = vunpack.c.l.b16 %v1133
      %v1411 = vunpack.c.h.b16 %v1133
      %v1412 = vunpack.c.l.b16 %v1134
      %v1413 = vunpack.c.h.b16 %v1134
      %v1414 = vunpack.c.l.b16 %v1135
      %v1415 = vunpack.c.h.b16 %v1135
      %v1416 = vunpack.c.l.b16 %v1136
      %v1417 = vunpack.c.h.b16 %v1136
      %v1418 = vunpack.c.l.b16 %v1137
      %v1419 = vunpack.c.h.b16 %v1137
      %v1420 = vunpack.c.l.b16 %v1138
      %v1421 = vunpack.c.h.b16 %v1138
      %v1422 = vunpack.c.l.b16 %v1139
      %v1423 = vunpack.c.h.b16 %v1139
      %v1424 = vunpack.c.l.b16 %v1140
      %v1425 = vunpack.c.h.b16 %v1140
      %v1426 = vunpack.c.l.b16 %v1141
      %v1427 = vunpack.c.h.b16 %v1141
      %v1428 = vunpack.c.l.b16 %v1142
      %v1429 = vunpack.c.h.b16 %v1142
      %v1430 = vunpack.c.l.b16 %v1143
      %v1431 = vunpack.c.h.b16 %v1143
      %v1432 = vunpack.c.l.b16 %v1144
      %v1433 = vunpack.c.h.b16 %v1144
      %v1434 = vunpack.c.l.b16 %v1145
      %v1435 = vunpack.c.h.b16 %v1145
      %v1436 = vunpack.c.l.b16 %v1146
      %v1437 = vunpack.c.h.b16 %v1146
      %v1438 = vunpack.c.l.b16 %v1147
      %v1439 = vunpack.c.h.b16 %v1147
      %v1440 = vunpack.c.l.b16 %v1148
      %v1441 = vunpack.c.h.b16 %v1148
      %v1442 = vunpack.c.l.b16 %v1149
      %v1443 = vunpack.c.h.b16 %v1149
      %v1444 = vunpack.c.l.b16 %v1150
      %v1445 = vunpack.c.h.b16 %v1150
      %v1446 = vunpack.c.l.b16 %v1151
      %v1447 = vunpack.c.h.b16 %v1151
      %v1448 = vunpack.c.l.b16 %v1152
      %v1449 = vunpack.c.h.b16 %v1152
      %v1450 = vunpack.c.l.b16 %v1153
      %v1451 = vunpack.c.h.b16 %v1153
      %v1452 = vunpack.c.l.b16 %v1154
      %v1453 = vunpack.c.h.b16 %v1154
      %v1454 = vunpack.c.l.b16 %v1155
      %v1455 = vunpack.c.h.b16 %v1155
      %v1456 = vunpack.c.l.b16 %v1156
      %v1457 = vunpack.c.h.b16 %v1156
      %v1458 = vunpack.c.l.b16 %v1157
      %v1459 = vunpack.c.h.b16 %v1157
      %v1460 = vunpack.c.l.b16 %v1158
      %v1461 = vunpack.c.h.b16 %v1158
      %v1462 = vunpack.c.l.b16 %v1159
      %v1463 = vunpack.c.h.b16 %v1159
      %v1464 = vunpack.c.l.b16 %v1160
      %v1465 = vunpack.c.h.b16 %v1160
      %v1466 = vunpack.c.l.b16 %v1161
      %v1467 = vunpack.c.h.b16 %v1161
      %v1468 = vunpack.c.l.b16 %v1162
      %v1469 = vunpack.c.h.b16 %v1162
      %v1470 = vunpack.c.l.b16 %v1163
      %v1471 = vunpack.c.h.b16 %v1163
      %v1472 = vunpack.c.l.b16 %v1164
      %v1473 = vunpack.c.h.b16 %v1164
      %v1474 = vunpack.c.l.b16 %v1165
      %v1475 = vunpack.c.h.b16 %v1165
      %v1476 = vunpack.c.l.b16 %v1166
      %v1477 = vunpack.c.h.b16 %v1166
      %v1478 = vunpack.c.l.b16 %v1167
      %v1479 = vunpack.c.h.b16 %v1167
      %v1480 = vunpack.c.l.b16 %v1168
      %v1481 = vunpack.c.h.b16 %v1168
      %v1482 = vunpack.c.l.b16 %v1169
      %v1483 = vunpack.c.h.b16 %v1169
      %v1484 = vunpack.c.l.b16 %v1170
      %v1485 = vunpack.c.h.b16 %v1170
      %v1486 = vunpack.c.l.b16 %v1171
      %v1487 = vunpack.c.h.b16 %v1171
      %v1488 = vunpack.c.l.b16 %v1172
      %v1489 = vunpack.c.h.b16 %v1172
      %v1490 = vunpack.c.l.b16 %v1173
      %v1491 = vunpack.c.h.b16 %v1173
      %v1492 = vunpack.c.l.b16 %v1174
      %v1493 = vunpack.c.h.b16 %v1174
      %v1494 = vunpack.c.l.b16 %v1175
      %v1495 = vunpack.c.h.b16 %v1175
      %v1496 = vunpack.c.l.b16 %v1176
      %v1497 = vunpack.c.h.b16 %v1176
      %v1498 = vunpack.c.l.b16 %v1177
      %v1499 = vunpack.c.h.b16 %v1177
      %v1500 = vunpack.c.l.b16 %v1178
      %v1501 = vunpack.c.h.b16 %v1178
      %v1502 = vunpack.c.l.b16 %v1179
      %v1503 = vunpack.c.h.b16 %v1179
      %v1504 = vunpack.c.l.b16 %v1180
      %v1505 = vunpack.c.h.b16 %v1180
      %v1506 = vunpack.c.l.b16 %v1181
      %v1507 = vunpack.c.h.b16 %v1181
      %v1508 = vunpack.c.l.b16 %v1182
      %v1509 = vunpack.c.h.b16 %v1182
      %v1510 = vunpack.c.l.b16 %v1183
      %v1511 = vunpack.c.h.b16 %v1183
      %v1512 = vunpack.c.l.b16 %v1184
      %v1513 = vunpack.c.h.b16 %v1184
      %v1514 = vunpack.c.l.b16 %v1185
      %v1515 = vunpack.c.h.b16 %v1185
      %v1516 = vunpack.c.l.b16 %v1186
      %v1517 = vunpack.c.h.b16 %v1186
      %v1518 = vunpack.c.l.b16 %v1187
      %v1519 = vunpack.c.h.b16 %v1187
      %v1520 = vunpack.c.l.b16 %v1188
      %v1521 = vunpack.c.h.b16 %v1188
      %v1522 = vunpack.c.l.b16 %v1189
      %v1523 = vunpack.c.h.b16 %v1189
      %v1524 = vunpack.c.l.b16 %v1190
      %v1525 = vunpack.c.h.b16 %v1190
      %v1526 = vunpack.c.l.b16 %v1191
      %v1527 = vunpack.c.h.b16 %v1191
      %v1528 = vunpack.c.l.b16 %v1192
      %v1529 = vunpack.c.h.b16 %v1192
      %v1530 = vunpack.c.l.b16 %v1193
      %v1531 = vunpack.c.h.b16 %v1193
      %v1532 = vunpack.c.l.b16 %v1194
      %v1533 = vunpack.c.h.b16 %v1194
      %v1534 = vunpack.c.l.b16 %v1195
      %v1535 = vunpack.c.h.b16 %v1195
      %v1536 = vunpack.c.l.b16 %v1196
      %v1537 = vunpack.c.h.b16 %v1196
      %v1538 = vunpack.c.l.b16 %v1197
      %v1539 = vunpack.c.h.b16 %v1197
      %v1540 = vunpack.c.l.b16 %v1198
      %v1541 = vunpack.c.h.b16 %v1198
      %v1542 = vunpack.c.l.b16 %v1199
      %v1543 = vunpack.c.h.b16 %v1199
      %v1544 = vunpack.c.l.b16 %v1200
      %v1545 = vunpack.c.h.b16 %v1200
      %v1546 = vunpack.c.l.b16 %v1201
      %v1547 = vunpack.c.h.b16 %v1201
      %v1548 = vunpack.c.l.b16 %v1202
      %v1549 = vunpack.c.h.b16 %v1202
      %v1550 = vunpack.c.l.b16 %v1203
      %v1551 = vunpack.c.h.b16 %v1203
      %v1552 = vunpack.c.l.b16 %v1204
      %v1553 = vunpack.c.h.b16 %v1204
      %v1554 = vunpack.c.l.b16 %v1205
      %v1555 = vunpack.c.h.b16 %v1205
      %v1556 = vunpack.c.l.b16 %v1206
      %v1557 = vunpack.c.h.b16 %v1206
      %v1558 = vunpack.c.l.b16 %v1207
      %v1559 = vunpack.c.h.b16 %v1207
      %v1560 = vunpack.c.l.b16 %v1208
      %v1561 = vunpack.c.h.b16 %v1208
      %v1562 = vunpack.c.l.b16 %v1209
      %v1563 = vunpack.c.h.b16 %v1209
      %v1564 = vunpack.c.l.b16 %v1210
      %v1565 = vunpack.c.h.b16 %v1210
      %v1566 = vunpack.c.l.b16 %v1211
      %v1567 = vunpack.c.h.b16 %v1211
      %v1568 = vunpack.c.l.b16 %v1212
      %v1569 = vunpack.c.h.b16 %v1212
      %v1570 = vunpack.c.l.b16 %v1213
      %v1571 = vunpack.c.h.b16 %v1213
      %v1572 = vunpack.c.l.b16 %v1214
      %v1573 = vunpack.c.h.b16 %v1214
      %v1574 = vunpack.c.l.b16 %v1215
      %v1575 = vunpack.c.h.b16 %v1215
      %v1576 = vunpack.c.l.b16 %v1216
      %v1577 = vunpack.c.h.b16 %v1216
      %v1578 = vunpack.c.l.b16 %v1217
      %v1579 = vunpack.c.h.b16 %v1217
      %v1580 = vunpack.c.l.b16 %v1218
      %v1581 = vunpack.c.h.b16 %v1218
      %v1582 = vunpack.c.l.b16 %v1219
      %v1583 = vunpack.c.h.b16 %v1219
      %v1584 = vunpack.c.l.b16 %v1220
      %v1585 = vunpack.c.h.b16 %v1220
      %v1586 = vunpack.c.l.b16 %v1221
      %v1587 = vunpack.c.h.b16 %v1221
      %v1588 = vunpack.c.l.b16 %v1222
      %v1589 = vunpack.c.h.b16 %v1222
      %v1590 = vunpack.c.l.b16 %v1223
      %v1591 = vunpack.c.h.b16 %v1223
      %v1592 = vunpack.c.l.b16 %v1224
      %v1593 = vunpack.c.h.b16 %v1224
      %v1594 = vunpack.c.l.b16 %v1225
      %v1595 = vunpack.c.h.b16 %v1225
      %v1596 = vunpack.c.l.b16 %v1226
      %v1597 = vunpack.c.h.b16 %v1226
      %v1598 = vunpack.c.l.b16 %v1227
      %v1599 = vunpack.c.h.b16 %v1227
      %v1600 = vunpack.c.l.b16 %v1228
      %v1601 = vunpack.c.h.b16 %v1228
      %v1602 = vunpack.c.l.b16 %v1229
      %v1603 = vunpack.c.h.b16 %v1229
      %v1604 = vunpack.c.l.b16 %v1230
      %v1605 = vunpack.c.h.b16 %v1230
      %v1606 = vunpack.c.l.b16 %v1231
      %v1607 = vunpack.c.h.b16 %v1231
      %v1608 = vunpack.c.l.b16 %v1232
      %v1609 = vunpack.c.h.b16 %v1232
      %v1610 = vunpack.c.l.b16 %v1233
      %v1611 = vunpack.c.h.b16 %v1233
      %v1612 = vunpack.c.l.b16 %v1234
      %v1613 = vunpack.c.h.b16 %v1234
      %v1614 = vunpack.c.l.b16 %v1235
      %v1615 = vunpack.c.h.b16 %v1235
      %v1616 = vunpack.c.l.b16 %v1236
      %v1617 = vunpack.c.h.b16 %v1236
      %v1618 = vunpack.c.l.b16 %v1237
      %v1619 = vunpack.c.h.b16 %v1237
      %v1620 = vunpack.c.l.b16 %v1238
      %v1621 = vunpack.c.h.b16 %v1238
      %v1622 = vunpack.c.l.b16 %v1239
      %v1623 = vunpack.c.h.b16 %v1239
      %v1624 = vpack.c.b16 %v1376, %v1368
      %v1625 = vpack.c.b16 %v1377, %v1369
      %v1626 = vpack.c.b16 %v1378, %v1370
      %v1627 = vpack.c.b16 %v1379, %v1371
      %v1628 = vpack.c.b16 %v1380, %v1372
      %v1629 = vpack.c.b16 %v1381, %v1373
      %v1630 = vpack.c.b16 %v1382, %v1374
      %v1631 = vpack.c.b16 %v1383, %v1375
      %v1632 = vpack.c.b16 %v1392, %v1384
      %v1633 = vpack.c.b16 %v1393, %v1385
      %v1634 = vpack.c.b16 %v1394, %v1386
      %v1635 = vpack.c.b16 %v1395, %v1387
      %v1636 = vpack.c.b16 %v1396, %v1388
      %v1637 = vpack.c.b16 %v1397, %v1389
      %v1638 = vpack.c.b16 %v1398, %v1390
      %v1639 = vpack.c.b16 %v1399, %v1391
      %v1640 = vpack.c.b16 %v1408, %v1400
      %v1641 = vpack.c.b16 %v1409, %v1401
      %v1642 = vpack.c.b16 %v1410, %v1402
      %v1643 = vpack.c.b16 %v1411, %v1403
      %v1644 = vpack.c.b16 %v1412, %v1404
      %v1645 = vpack.c.b16 %v1413, %v1405
      %v1646 = vpack.c.b16 %v1414, %v1406
      %v1647 = vpack.c.b16 %v1415, %v1407
      %v1648 = vpack.c.b16 %v1424, %v1416
      %v1649 = vpack.c.b16 %v1425, %v1417
      %v1650 = vpack.c.b16 %v1426, %v1418
      %v1651 = vpack.c.b16 %v1427, %v1419
      %v1652 = vpack.c.b16 %v1428, %v1420
      %v1653 = vpack.c.b16 %v1429, %v1421
      %v1654 = vpack.c.b16 %v1430, %v1422
      %v1655 = vpack.c.b16 %v1431, %v1423
      %v1656 = vpack.c.b16 %v1440, %v1432
      %v1657 = vpack.c.b16 %v1441, %v1433
      %v1658 = vpack.c.b16 %v1442, %v1434
      %v1659 = vpack.c.b16 %v1443, %v1435
      %v1660 = vpack.c.b16 %v1444, %v1436
      %v1661 = vpack.c.b16 %v1445, %v1437
      %v1662 = vpack.c.b16 %v1446, %v1438
      %v1663 = vpack.c.b16 %v1447, %v1439
      %v1664 = vpack.c.b16 %v1456, %v1448
      %v1665 = vpack.c.b16 %v1457, %v1449
      %v1666 = vpack.c.b16 %v1458, %v1450
      %v1667 = vpack.c.b16 %v1459, %v1451
      %v1668 = vpack.c.b16 %v1460, %v1452
      %v1669 = vpack.c.b16 %v1461, %v1453
      %v1670 = vpack.c.b16 %v1462, %v1454
      %v1671 = vpack.c.b16 %v1463, %v1455
      %v1672 = vpack.c.b16 %v1472, %v1464
      %v1673 = vpack.c.b16 %v1473, %v1465
      %v1674 = vpack.c.b16 %v1474, %v1466
      %v1675 = vpack.c.b16 %v1475, %v1467
      %v1676 = vpack.c.b16 %v1476, %v1468
      %v1677 = vpack.c.b16 %v1477, %v1469
      %v1678 = vpack.c.b16 %v1478, %v1470
      %v1679 = vpack.c.b16 %v1479, %v1471
      %v1680 = vpack.c.b16 %v1488, %v1480
      %v1681 = vpack.c.b16 %v1489, %v1481
      %v1682 = vpack.c.b16 %v1490, %v1482
      %v1683 = vpack.c.b16 %v1491, %v1483
      %v1684 = vpack.c.b16 %v1492, %v1484
      %v1685 = vpack.c.b16 %v1493, %v1485
      %v1686 = vpack.c.b16 %v1494, %v1486
      %v1687 = vpack.c.b16 %v1495, %v1487
      %v1688 = vpack.c.b16 %v1504, %v1496
      %v1689 = vpack.c.b16 %v1505, %v1497
      %v1690 = vpack.c.b16 %v1506, %v1498
      %v1691 = vpack.c.b16 %v1507, %v1499
      %v1692 = vpack.c.b16 %v1508, %v1500
      %v1693 = vpack.c.b16 %v1509, %v1501
      %v1694 = vpack.c.b16 %v1510, %v1502
      %v1695 = vpack.c.b16 %v1511, %v1503
      %v1696 = vpack.c.b16 %v1520, %v1512
      %v1697 = vpack.c.b16 %v1521, %v1513
      %v1698 = vpack.c.b16 %v1522, %v1514
      %v1699 = vpack.c.b16 %v1523, %v1515
      %v1700 = vpack.c.b16 %v1524, %v1516
      %v1701 = vpack.c.b16 %v1525, %v1517
      %v1702 = vpack.c.b16 %v1526, %v1518
      %v1703 = vpack.c.b16 %v1527, %v1519
      %v1704 = vpack.c.b16 %v1536, %v1528
      %v1705 = vpack.c.b16 %v1537, %v1529
      %v1706 = vpack.c.b16 %v1538, %v1530
      %v1707 = vpack.c.b16 %v1539, %v1531
      %v1708 = vpack.c.b16 %v1540, %v1532
      %v1709 = vpack.c.b16 %v1541, %v1533
      %v1710 = vpack.c.b16 %v1542, %v1534
      %v1711 = vpack.c.b16 %v1543, %v1535
      %v1712 = vpack.c.b16 %v1552, %v1544
      %v1713 = vpack.c.b16 %v1553, %v1545
      %v1714 = vpack.c.b16 %v1554, %v1546
      %v1715 = vpack.c.b16 %v1555, %v1547
      %v1716 = vpack.c.b16 %v1556, %v1548
      %v1717 = vpack.c.b16 %v1557, %v1549
      %v1718 = vpack.c.b16 %v1558, %v1550
      %v1719 = vpack.c.b16 %v1559, %v1551
      %v1720 = vpack.c.b16 %v1568, %v1560
      %v1721 = vpack.c.b16 %v1569, %v1561
      %v1722 = vpack.c.b16 %v1570, %v1562
      %v1723 = vpack.c.b16 %v1571, %v1563
      %v1724 = vpack.c.b16 %v1572, %v1564
      %v1725 = vpack.c.b16 %v1573, %v1565
      %v1726 = vpack.c.b16 %v1574, %v1566
      %v1727 = vpack.c.b16 %v1575, %v1567
      %v1728 = vpack.c.b16 %v1584, %v1576
      %v1729 = vpack.c.b16 %v1585, %v1577
      %v1730 = vpack.c.b16 %v1586, %v1578
      %v1731 = vpack.c.b16 %v1587, %v1579
      %v1732 = vpack.c.b16 %v1588, %v1580
      %v1733 = vpack.c.b16 %v1589, %v1581
      %v1734 = vpack.c.b16 %v1590, %v1582
      %v1735 = vpack.c.b16 %v1591, %v1583
      %v1736 = vpack.c.b16 %v1600, %v1592
      %v1737 = vpack.c.b16 %v1601, %v1593
      %v1738 = vpack.c.b16 %v1602, %v1594
      %v1739 = vpack.c.b16 %v1603, %v1595
      %v1740 = vpack.c.b16 %v1604, %v1596
      %v1741 = vpack.c.b16 %v1605, %v1597
      %v1742 = vpack.c.b16 %v1606, %v1598
      %v1743 = vpack.c.b16 %v1607, %v1599
      %v1744 = vpack.c.b16 %v1616, %v1608
      %v1745 = vpack.c.b16 %v1617, %v1609
      %v1746 = vpack.c.b16 %v1618, %v1610
      %v1747 = vpack.c.b16 %v1619, %v1611
      %v1748 = vpack.c.b16 %v1620, %v1612
      %v1749 = vpack.c.b16 %v1621, %v1613
      %v1750 = vpack.c.b16 %v1622, %v1614
      %v1751 = vpack.c.b16 %v1623, %v1615
      %1880 = vmatprep.subr.bf16.mxu0 %v1625
      %1881 = vmatpush1.bf16.msra.mxu0 %v1624
      %1882 = vmatprep.subr.bf16.mxu0 %v1633
      %1883 = vmatpush1.bf16.msra.mxu0 %v1632
      %1884 = vmatprep.subr.bf16.mxu0 %v1641
      %1885 = vmatpush1.bf16.msra.mxu0 %v1640
      %1886 = vmatprep.subr.bf16.mxu0 %v1649
      %1887 = vmatpush1.bf16.msra.mxu0 %v1648
      %1888 = vmatprep.subr.bf16.mxu0 %v1657
      %1889 = vmatpush1.bf16.msra.mxu0 %v1656
      %1890 = vmatprep.subr.bf16.mxu0 %v1665
      %1891 = vmatpush1.bf16.msra.mxu0 %v1664
      %1892 = vmatprep.subr.bf16.mxu0 %v1673
      %1893 = vmatpush1.bf16.msra.mxu0 %v1672
      %1894 = vmatprep.subr.bf16.mxu0 %v1681
      %1895 = vmatpush1.bf16.msra.mxu0 %v1680
      %1896 = vmatprep.subr.bf16.mxu0 %v1689
      %1897 = vmatpush1.bf16.msra.mxu0 %v1688
      %1898 = vmatprep.subr.bf16.mxu0 %v1697
      %1899 = vmatpush1.bf16.msra.mxu0 %v1696
      %1900 = vmatprep.subr.bf16.mxu0 %v1705
      %1901 = vmatpush1.bf16.msra.mxu0 %v1704
      %1902 = vmatprep.subr.bf16.mxu0 %v1713
      %1903 = vmatpush1.bf16.msra.mxu0 %v1712
      %1904 = vmatprep.subr.bf16.mxu0 %v1721
      %1905 = vmatpush1.bf16.msra.mxu0 %v1720
      %1906 = vmatprep.subr.bf16.mxu0 %v1729
      %1907 = vmatpush1.bf16.msra.mxu0 %v1728
      %1908 = vmatprep.subr.bf16.mxu0 %v1737
      %1909 = vmatpush1.bf16.msra.mxu0 %v1736
      %1910 = vmatprep.subr.bf16.mxu0 %v1745
      %1911 = vmatpush1.bf16.msra.mxu0 %v1744
      %1912 = vmatprep.mubr.bf16.mxu0 %v1097
      %1913 = vmatmul.mubr.bf16.gmra.mrb[0].mxu0 %v1096
      %v1914 = vpop.f32.mrb[0].mxu0
      %v1915 = vadd.f32 0.0, %v1914
      %v1916 = vpop.f32.mrb[0].mxu0
      %v1917 = vadd.f32 0.0, %v1916
      %v1918 = vpop.f32.mrb[0].mxu0
      %v1919 = vadd.f32 0.0, %v1918
      %v1920 = vpop.f32.mrb[0].mxu0
      %v1921 = vadd.f32 0.0, %v1920
      %1922 = vmatprep.mubr.bf16.mxu0 %v1099
      %1923 = vmatmul.mubr.bf16.gmra.mrb[0].mxu0 %v1098
      %v1924 = vpop.f32.mrb[0].mxu0
      %v1925 = vadd.f32 0.0, %v1924
      %v1926 = vpop.f32.mrb[0].mxu0
      %v1927 = vadd.f32 0.0, %v1926
      %v1928 = vpop.f32.mrb[0].mxu0
      %v1929 = vadd.f32 0.0, %v1928
      %v1930 = vpop.f32.mrb[0].mxu0
      %v1931 = vadd.f32 0.0, %v1930
      %1932 = vmatprep.mubr.bf16.mxu0 %v1101
      %1933 = vmatmul.mubr.bf16.gmra.mrb[0].mxu0 %v1100
      %v1934 = vpop.f32.mrb[0].mxu0
      %v1935 = vadd.f32 0.0, %v1934
      %v1936 = vpop.f32.mrb[0].mxu0
      %v1937 = vadd.f32 0.0, %v1936
      %v1938 = vpop.f32.mrb[0].mxu0
      %v1939 = vadd.f32 0.0, %v1938
      %v1940 = vpop.f32.mrb[0].mxu0
      %v1941 = vadd.f32 0.0, %v1940
      %1942 = vmatprep.mubr.bf16.mxu0 %v1103
      %1943 = vmatmul.mubr.bf16.gmra.mrb[0].mxu0 %v1102
      %v1944 = vpop.f32.mrb[0].mxu0
      %v1945 = vadd.f32 0.0, %v1944
      %v1946 = vpop.f32.mrb[0].mxu0
      %v1947 = vadd.f32 0.0, %v1946
      %v1948 = vpop.f32.mrb[0].mxu0
      %v1949 = vadd.f32 0.0, %v1948
      %v1950 = vpop.f32.mrb[0].mxu0
      %v1951 = vadd.f32 0.0, %v1950
      %1952 = vmatprep.mubr.bf16.mxu0 %v1105
      %1953 = vmatmul.mubr.bf16.gmra.mrb[0].mxu0 %v1104
      %v1954 = vpop.f32.mrb[0].mxu0
      %v1955 = vadd.f32 0.0, %v1954
      %v1956 = vpop.f32.mrb[0].mxu0
      %v1957 = vadd.f32 0.0, %v1956
      %v1958 = vpop.f32.mrb[0].mxu0
      %v1959 = vadd.f32 0.0, %v1958
      %v1960 = vpop.f32.mrb[0].mxu0
      %v1961 = vadd.f32 0.0, %v1960
      %1962 = vmatprep.mubr.bf16.mxu0 %v1107
      %1963 = vmatmul.mubr.bf16.gmra.mrb[0].mxu0 %v1106
      %v1964 = vpop.f32.mrb[0].mxu0
      %v1965 = vadd.f32 0.0, %v1964
      %v1966 = vpop.f32.mrb[0].mxu0
      %v1967 = vadd.f32 0.0, %v1966
      %v1968 = vpop.f32.mrb[0].mxu0
      %v1969 = vadd.f32 0.0, %v1968
      %v1970 = vpop.f32.mrb[0].mxu0
      %v1971 = vadd.f32 0.0, %v1970
      %1972 = vmatprep.mubr.bf16.mxu0 %v1109
      %1973 = vmatmul.mubr.bf16.gmra.mrb[0].mxu0 %v1108
      %v1974 = vpop.f32.mrb[0].mxu0
      %v1975 = vadd.f32 0.0, %v1974
      %v1976 = vpop.f32.mrb[0].mxu0
      %v1977 = vadd.f32 0.0, %v1976
      %v1978 = vpop.f32.mrb[0].mxu0
      %v1979 = vadd.f32 0.0, %v1978
      %v1980 = vpop.f32.mrb[0].mxu0
      %v1981 = vadd.f32 0.0, %v1980
      %1982 = vmatprep.mubr.bf16.mxu0 %v1111
      %1983 = vmatmul.mubr.bf16.gmra.mrb[0].mxu0 %v1110
      %v1984 = vpop.f32.mrb[0].mxu0
      %v1985 = vadd.f32 0.0, %v1984
      %v1986 = vpop.f32.mrb[0].mxu0
      %v1987 = vadd.f32 0.0, %v1986
      %v1988 = vpop.f32.mrb[0].mxu0
      %v1989 = vadd.f32 0.0, %v1988
      %v1990 = vpop.f32.mrb[0].mxu0
      %v1991 = vadd.f32 0.0, %v1990
      %1992 = vdwg.mxu0
      %1993 = vmatprep.subr.bf16.mxu0 %v1627
      %1994 = vmatpush1.bf16.msra.mxu0 %v1626
      %1995 = vmatprep.subr.bf16.mxu0 %v1635
      %1996 = vmatpush1.bf16.msra.mxu0 %v1634
      %1997 = vmatprep.subr.bf16.mxu0 %v1643
      %1998 = vmatpush1.bf16.msra.mxu0 %v1642
      %1999 = vmatprep.subr.bf16.mxu0 %v1651
      %2000 = vmatpush1.bf16.msra.mxu0 %v1650
      %2001 = vmatprep.subr.bf16.mxu0 %v1659
      %2002 = vmatpush1.bf16.msra.mxu0 %v1658
      %2003 = vmatprep.subr.bf16.mxu0 %v1667
      %2004 = vmatpush1.bf16.msra.mxu0 %v1666
      %2005 = vmatprep.subr.bf16.mxu0 %v1675
      %2006 = vmatpush1.bf16.msra.mxu0 %v1674
      %2007 = vmatprep.subr.bf16.mxu0 %v1683
      %2008 = vmatpush1.bf16.msra.mxu0 %v1682
      %2009 = vmatprep.subr.bf16.mxu0 %v1691
      %2010 = vmatpush1.bf16.msra.mxu0 %v1690
      %2011 = vmatprep.subr.bf16.mxu0 %v1699
      %2012 = vmatpush1.bf16.msra.mxu0 %v1698
      %2013 = vmatprep.subr.bf16.mxu0 %v1707
      %2014 = vmatpush1.bf16.msra.mxu0 %v1706
      %2015 = vmatprep.subr.bf16.mxu0 %v1715
      %2016 = vmatpush1.bf16.msra.mxu0 %v1714
      %2017 = vmatprep.subr.bf16.mxu0 %v1723
      %2018 = vmatpush1.bf16.msra.mxu0 %v1722
      %2019 = vmatprep.subr.bf16.mxu0 %v1731
      %2020 = vmatpush1.bf16.msra.mxu0 %v1730
      %2021 = vmatprep.subr.bf16.mxu0 %v1739
      %2022 = vmatpush1.bf16.msra.mxu0 %v1738
      %2023 = vmatprep.subr.bf16.mxu0 %v1747
      %2024 = vmatpush1.bf16.msra.mxu0 %v1746
      %2025 = vmatprep.mubr.bf16.mxu0 %v1097
      %2026 = vmatmul.mubr.bf16.gmra.mrb[0].mxu0 %v1096
      %v2027 = vpop.f32.mrb[0].mxu0
      %v2028 = vadd.f32 0.0, %v2027
      %v2029 = vpop.f32.mrb[0].mxu0
      %v2030 = vadd.f32 0.0, %v2029
      %v2031 = vpop.f32.mrb[0].mxu0
      %v2032 = vadd.f32 0.0, %v2031
      %v2033 = vpop.f32.mrb[0].mxu0
      %v2034 = vadd.f32 0.0, %v2033
      %2035 = vmatprep.mubr.bf16.mxu0 %v1099
      %2036 = vmatmul.mubr.bf16.gmra.mrb[0].mxu0 %v1098
      %v2037 = vpop.f32.mrb[0].mxu0
      %v2038 = vadd.f32 0.0, %v2037
      %v2039 = vpop.f32.mrb[0].mxu0
      %v2040 = vadd.f32 0.0, %v2039
      %v2041 = vpop.f32.mrb[0].mxu0
      %v2042 = vadd.f32 0.0, %v2041
      %v2043 = vpop.f32.mrb[0].mxu0
      %v2044 = vadd.f32 0.0, %v2043
      %2045 = vmatprep.mubr.bf16.mxu0 %v1101
      %2046 = vmatmul.mubr.bf16.gmra.mrb[0].mxu0 %v1100
      %v2047 = vpop.f32.mrb[0].mxu0
      %v2048 = vadd.f32 0.0, %v2047
      %v2049 = vpop.f32.mrb[0].mxu0
      %v2050 = vadd.f32 0.0, %v2049
      %v2051 = vpop.f32.mrb[0].mxu0
      %v2052 = vadd.f32 0.0, %v2051
      %v2053 = vpop.f32.mrb[0].mxu0
      %v2054 = vadd.f32 0.0, %v2053
      %2055 = vmatprep.mubr.bf16.mxu0 %v1103
      %2056 = vmatmul.mubr.bf16.gmra.mrb[0].mxu0 %v1102
      %v2057 = vpop.f32.mrb[0].mxu0
      %v2058 = vadd.f32 0.0, %v2057
      %v2059 = vpop.f32.mrb[0].mxu0
      %v2060 = vadd.f32 0.0, %v2059
      %v2061 = vpop.f32.mrb[0].mxu0
      %v2062 = vadd.f32 0.0, %v2061
      %v2063 = vpop.f32.mrb[0].mxu0
      %v2064 = vadd.f32 0.0, %v2063
      %2065 = vmatprep.mubr.bf16.mxu0 %v1105
      %2066 = vmatmul.mubr.bf16.gmra.mrb[0].mxu0 %v1104
      %v2067 = vpop.f32.mrb[0].mxu0
      %v2068 = vadd.f32 0.0, %v2067
      %v2069 = vpop.f32.mrb[0].mxu0
      %v2070 = vadd.f32 0.0, %v2069
      %v2071 = vpop.f32.mrb[0].mxu0
      %v2072 = vadd.f32 0.0, %v2071
      %v2073 = vpop.f32.mrb[0].mxu0
      %v2074 = vadd.f32 0.0, %v2073
      %2075 = vmatprep.mubr.bf16.mxu0 %v1107
      %2076 = vmatmul.mubr.bf16.gmra.mrb[0].mxu0 %v1106
      %v2077 = vpop.f32.mrb[0].mxu0
      %v2078 = vadd.f32 0.0, %v2077
      %v2079 = vpop.f32.mrb[0].mxu0
      %v2080 = vadd.f32 0.0, %v2079
      %v2081 = vpop.f32.mrb[0].mxu0
      %v2082 = vadd.f32 0.0, %v2081
      %v2083 = vpop.f32.mrb[0].mxu0
      %v2084 = vadd.f32 0.0, %v2083
      %2085 = vmatprep.mubr.bf16.mxu0 %v1109
      %2086 = vmatmul.mubr.bf16.gmra.mrb[0].mxu0 %v1108
      %v2087 = vpop.f32.mrb[0].mxu0
      %v2088 = vadd.f32 0.0, %v2087
      %v2089 = vpop.f32.mrb[0].mxu0
      %v2090 = vadd.f32 0.0, %v2089
      %v2091 = vpop.f32.mrb[0].mxu0
      %v2092 = vadd.f32 0.0, %v2091
      %v2093 = vpop.f32.mrb[0].mxu0
      %v2094 = vadd.f32 0.0, %v2093
      %2095 = vmatprep.mubr.bf16.mxu0 %v1111
      %2096 = vmatmul.mubr.bf16.gmra.mrb[0].mxu0 %v1110
      %v2097 = vpop.f32.mrb[0].mxu0
      %v2098 = vadd.f32 0.0, %v2097
      %v2099 = vpop.f32.mrb[0].mxu0
      %v2100 = vadd.f32 0.0, %v2099
      %v2101 = vpop.f32.mrb[0].mxu0
      %v2102 = vadd.f32 0.0, %v2101
      %v2103 = vpop.f32.mrb[0].mxu0
      %v2104 = vadd.f32 0.0, %v2103
      %2105 = vdwg.mxu0
      %2106 = vmatprep.subr.bf16.mxu0 %v1629
      %2107 = vmatpush1.bf16.msra.mxu0 %v1628
      %2108 = vmatprep.subr.bf16.mxu0 %v1637
      %2109 = vmatpush1.bf16.msra.mxu0 %v1636
      %2110 = vmatprep.subr.bf16.mxu0 %v1645
      %2111 = vmatpush1.bf16.msra.mxu0 %v1644
      %2112 = vmatprep.subr.bf16.mxu0 %v1653
      %2113 = vmatpush1.bf16.msra.mxu0 %v1652
      %2114 = vmatprep.subr.bf16.mxu0 %v1661
      %2115 = vmatpush1.bf16.msra.mxu0 %v1660
      %2116 = vmatprep.subr.bf16.mxu0 %v1669
      %2117 = vmatpush1.bf16.msra.mxu0 %v1668
      %2118 = vmatprep.subr.bf16.mxu0 %v1677
      %2119 = vmatpush1.bf16.msra.mxu0 %v1676
      %2120 = vmatprep.subr.bf16.mxu0 %v1685
      %2121 = vmatpush1.bf16.msra.mxu0 %v1684
      %2122 = vmatprep.subr.bf16.mxu0 %v1693
      %2123 = vmatpush1.bf16.msra.mxu0 %v1692
      %2124 = vmatprep.subr.bf16.mxu0 %v1701
      %2125 = vmatpush1.bf16.msra.mxu0 %v1700
      %2126 = vmatprep.subr.bf16.mxu0 %v1709
      %2127 = vmatpush1.bf16.msra.mxu0 %v1708
      %2128 = vmatprep.subr.bf16.mxu0 %v1717
      %2129 = vmatpush1.bf16.msra.mxu0 %v1716
      %2130 = vmatprep.subr.bf16.mxu0 %v1725
      %2131 = vmatpush1.bf16.msra.mxu0 %v1724
      %2132 = vmatprep.subr.bf16.mxu0 %v1733
      %2133 = vmatpush1.bf16.msra.mxu0 %v1732
      %2134 = vmatprep.subr.bf16.mxu0 %v1741
      %2135 = vmatpush1.bf16.msra.mxu0 %v1740
      %2136 = vmatprep.subr.bf16.mxu0 %v1749
      %2137 = vmatpush1.bf16.msra.mxu0 %v1748
      %2138 = vmatprep.mubr.bf16.mxu0 %v1097
      %2139 = vmatmul.mubr.bf16.gmra.mrb[0].mxu0 %v1096
      %v2140 = vpop.f32.mrb[0].mxu0
      %v2141 = vadd.f32 0.0, %v2140
      %v2142 = vpop.f32.mrb[0].mxu0
      %v2143 = vadd.f32 0.0, %v2142
      %v2144 = vpop.f32.mrb[0].mxu0
      %v2145 = vadd.f32 0.0, %v2144
      %v2146 = vpop.f32.mrb[0].mxu0
      %v2147 = vadd.f32 0.0, %v2146
      %2148 = vmatprep.mubr.bf16.mxu0 %v1099
      %2149 = vmatmul.mubr.bf16.gmra.mrb[0].mxu0 %v1098
      %v2150 = vpop.f32.mrb[0].mxu0
      %v2151 = vadd.f32 0.0, %v2150
      %v2152 = vpop.f32.mrb[0].mxu0
      %v2153 = vadd.f32 0.0, %v2152
      %v2154 = vpop.f32.mrb[0].mxu0
      %v2155 = vadd.f32 0.0, %v2154
      %v2156 = vpop.f32.mrb[0].mxu0
      %v2157 = vadd.f32 0.0, %v2156
      %2158 = vmatprep.mubr.bf16.mxu0 %v1101
      %2159 = vmatmul.mubr.bf16.gmra.mrb[0].mxu0 %v1100
      %v2160 = vpop.f32.mrb[0].mxu0
      %v2161 = vadd.f32 0.0, %v2160
      %v2162 = vpop.f32.mrb[0].mxu0
      %v2163 = vadd.f32 0.0, %v2162
      %v2164 = vpop.f32.mrb[0].mxu0
      %v2165 = vadd.f32 0.0, %v2164
      %v2166 = vpop.f32.mrb[0].mxu0
      %v2167 = vadd.f32 0.0, %v2166
      %2168 = vmatprep.mubr.bf16.mxu0 %v1103
      %2169 = vmatmul.mubr.bf16.gmra.mrb[0].mxu0 %v1102
      %v2170 = vpop.f32.mrb[0].mxu0
      %v2171 = vadd.f32 0.0, %v2170
      %v2172 = vpop.f32.mrb[0].mxu0
      %v2173 = vadd.f32 0.0, %v2172
      %v2174 = vpop.f32.mrb[0].mxu0
      %v2175 = vadd.f32 0.0, %v2174
      %v2176 = vpop.f32.mrb[0].mxu0
      %v2177 = vadd.f32 0.0, %v2176
      %2178 = vmatprep.mubr.bf16.mxu0 %v1105
      %2179 = vmatmul.mubr.bf16.gmra.mrb[0].mxu0 %v1104
      %v2180 = vpop.f32.mrb[0].mxu0
      %v2181 = vadd.f32 0.0, %v2180
      %v2182 = vpop.f32.mrb[0].mxu0
      %v2183 = vadd.f32 0.0, %v2182
      %v2184 = vpop.f32.mrb[0].mxu0
      %v2185 = vadd.f32 0.0, %v2184
      %v2186 = vpop.f32.mrb[0].mxu0
      %v2187 = vadd.f32 0.0, %v2186
      %2188 = vmatprep.mubr.bf16.mxu0 %v1107
      %2189 = vmatmul.mubr.bf16.gmra.mrb[0].mxu0 %v1106
      %v2190 = vpop.f32.mrb[0].mxu0
      %v2191 = vadd.f32 0.0, %v2190
      %v2192 = vpop.f32.mrb[0].mxu0
      %v2193 = vadd.f32 0.0, %v2192
      %v2194 = vpop.f32.mrb[0].mxu0
      %v2195 = vadd.f32 0.0, %v2194
      %v2196 = vpop.f32.mrb[0].mxu0
      %v2197 = vadd.f32 0.0, %v2196
      %2198 = vmatprep.mubr.bf16.mxu0 %v1109
      %2199 = vmatmul.mubr.bf16.gmra.mrb[0].mxu0 %v1108
      %v2200 = vpop.f32.mrb[0].mxu0
      %v2201 = vadd.f32 0.0, %v2200
      %v2202 = vpop.f32.mrb[0].mxu0
      %v2203 = vadd.f32 0.0, %v2202
      %v2204 = vpop.f32.mrb[0].mxu0
      %v2205 = vadd.f32 0.0, %v2204
      %v2206 = vpop.f32.mrb[0].mxu0
      %v2207 = vadd.f32 0.0, %v2206
      %2208 = vmatprep.mubr.bf16.mxu0 %v1111
      %2209 = vmatmul.mubr.bf16.gmra.mrb[0].mxu0 %v1110
      %v2210 = vpop.f32.mrb[0].mxu0
      %v2211 = vadd.f32 0.0, %v2210
      %v2212 = vpop.f32.mrb[0].mxu0
      %v2213 = vadd.f32 0.0, %v2212
      %v2214 = vpop.f32.mrb[0].mxu0
      %v2215 = vadd.f32 0.0, %v2214
      %v2216 = vpop.f32.mrb[0].mxu0
      %v2217 = vadd.f32 0.0, %v2216
      %2218 = vdwg.mxu0
      %2219 = vmatprep.subr.bf16.mxu0 %v1631
      %2220 = vmatpush1.bf16.msra.mxu0 %v1630
      %2221 = vmatprep.subr.bf16.mxu0 %v1639
      %2222 = vmatpush1.bf16.msra.mxu0 %v1638
      %2223 = vmatprep.subr.bf16.mxu0 %v1647
      %2224 = vmatpush1.bf16.msra.mxu0 %v1646
      %2225 = vmatprep.subr.bf16.mxu0 %v1655
      %2226 = vmatpush1.bf16.msra.mxu0 %v1654
      %2227 = vmatprep.subr.bf16.mxu0 %v1663
      %2228 = vmatpush1.bf16.msra.mxu0 %v1662
      %2229 = vmatprep.subr.bf16.mxu0 %v1671
      %2230 = vmatpush1.bf16.msra.mxu0 %v1670
      %2231 = vmatprep.subr.bf16.mxu0 %v1679
      %2232 = vmatpush1.bf16.msra.mxu0 %v1678
      %2233 = vmatprep.subr.bf16.mxu0 %v1687
      %2234 = vmatpush1.bf16.msra.mxu0 %v1686
      %2235 = vmatprep.subr.bf16.mxu0 %v1695
      %2236 = vmatpush1.bf16.msra.mxu0 %v1694
      %2237 = vmatprep.subr.bf16.mxu0 %v1703
      %2238 = vmatpush1.bf16.msra.mxu0 %v1702
      %2239 = vmatprep.subr.bf16.mxu0 %v1711
      %2240 = vmatpush1.bf16.msra.mxu0 %v1710
      %2241 = vmatprep.subr.bf16.mxu0 %v1719
      %2242 = vmatpush1.bf16.msra.mxu0 %v1718
      %2243 = vmatprep.subr.bf16.mxu0 %v1727
      %2244 = vmatpush1.bf16.msra.mxu0 %v1726
      %2245 = vmatprep.subr.bf16.mxu0 %v1735
      %2246 = vmatpush1.bf16.msra.mxu0 %v1734
      %2247 = vmatprep.subr.bf16.mxu0 %v1743
      %2248 = vmatpush1.bf16.msra.mxu0 %v1742
      %2249 = vmatprep.subr.bf16.mxu0 %v1751
      %2250 = vmatpush1.bf16.msra.mxu0 %v1750
      %2251 = vmatprep.mubr.bf16.mxu0 %v1097
      %2252 = vmatmul.mubr.bf16.gmra.mrb[0].mxu0 %v1096
      %v2253 = vpop.f32.mrb[0].mxu0
      %v2254 = vadd.f32 0.0, %v2253
      %v2255 = vpop.f32.mrb[0].mxu0
      %v2256 = vadd.f32 0.0, %v2255
      %v2257 = vpop.f32.mrb[0].mxu0
      %v2258 = vadd.f32 0.0, %v2257
      %v2259 = vpop.f32.mrb[0].mxu0
      %v2260 = vadd.f32 0.0, %v2259
      %2261 = vmatprep.mubr.bf16.mxu0 %v1099
      %2262 = vmatmul.mubr.bf16.gmra.mrb[0].mxu0 %v1098
      %v2263 = vpop.f32.mrb[0].mxu0
      %v2264 = vadd.f32 0.0, %v2263
      %v2265 = vpop.f32.mrb[0].mxu0
      %v2266 = vadd.f32 0.0, %v2265
      %v2267 = vpop.f32.mrb[0].mxu0
      %v2268 = vadd.f32 0.0, %v2267
      %v2269 = vpop.f32.mrb[0].mxu0
      %v2270 = vadd.f32 0.0, %v2269
      %2271 = vmatprep.mubr.bf16.mxu0 %v1101
      %2272 = vmatmul.mubr.bf16.gmra.mrb[0].mxu0 %v1100
      %v2273 = vpop.f32.mrb[0].mxu0
      %v2274 = vadd.f32 0.0, %v2273
      %v2275 = vpop.f32.mrb[0].mxu0
      %v2276 = vadd.f32 0.0, %v2275
      %v2277 = vpop.f32.mrb[0].mxu0
      %v2278 = vadd.f32 0.0, %v2277
      %v2279 = vpop.f32.mrb[0].mxu0
      %v2280 = vadd.f32 0.0, %v2279
      %2281 = vmatprep.mubr.bf16.mxu0 %v1103
      %2282 = vmatmul.mubr.bf16.gmra.mrb[0].mxu0 %v1102
      %v2283 = vpop.f32.mrb[0].mxu0
      %v2284 = vadd.f32 0.0, %v2283
      %v2285 = vpop.f32.mrb[0].mxu0
      %v2286 = vadd.f32 0.0, %v2285
      %v2287 = vpop.f32.mrb[0].mxu0
      %v2288 = vadd.f32 0.0, %v2287
      %v2289 = vpop.f32.mrb[0].mxu0
      %v2290 = vadd.f32 0.0, %v2289
      %2291 = vmatprep.mubr.bf16.mxu0 %v1105
      %2292 = vmatmul.mubr.bf16.gmra.mrb[0].mxu0 %v1104
      %v2293 = vpop.f32.mrb[0].mxu0
      %v2294 = vadd.f32 0.0, %v2293
      %v2295 = vpop.f32.mrb[0].mxu0
      %v2296 = vadd.f32 0.0, %v2295
      %v2297 = vpop.f32.mrb[0].mxu0
      %v2298 = vadd.f32 0.0, %v2297
      %v2299 = vpop.f32.mrb[0].mxu0
      %v2300 = vadd.f32 0.0, %v2299
      %2301 = vmatprep.mubr.bf16.mxu0 %v1107
      %2302 = vmatmul.mubr.bf16.gmra.mrb[0].mxu0 %v1106
      %v2303 = vpop.f32.mrb[0].mxu0
      %v2304 = vadd.f32 0.0, %v2303
      %v2305 = vpop.f32.mrb[0].mxu0
      %v2306 = vadd.f32 0.0, %v2305
      %v2307 = vpop.f32.mrb[0].mxu0
      %v2308 = vadd.f32 0.0, %v2307
      %v2309 = vpop.f32.mrb[0].mxu0
      %v2310 = vadd.f32 0.0, %v2309
      %2311 = vmatprep.mubr.bf16.mxu0 %v1109
      %2312 = vmatmul.mubr.bf16.gmra.mrb[0].mxu0 %v1108
      %v2313 = vpop.f32.mrb[0].mxu0
      %v2314 = vadd.f32 0.0, %v2313
      %v2315 = vpop.f32.mrb[0].mxu0
      %v2316 = vadd.f32 0.0, %v2315
      %v2317 = vpop.f32.mrb[0].mxu0
      %v2318 = vadd.f32 0.0, %v2317
      %v2319 = vpop.f32.mrb[0].mxu0
      %v2320 = vadd.f32 0.0, %v2319
      %2321 = vmatprep.mubr.bf16.mxu0 %v1111
      %2322 = vmatmul.mubr.bf16.gmra.mrb[0].mxu0 %v1110
      %v2323 = vpop.f32.mrb[0].mxu0
      %v2324 = vadd.f32 0.0, %v2323
      %v2325 = vpop.f32.mrb[0].mxu0
      %v2326 = vadd.f32 0.0, %v2325
      %v2327 = vpop.f32.mrb[0].mxu0
      %v2328 = vadd.f32 0.0, %v2327
      %v2329 = vpop.f32.mrb[0].mxu0
      %v2330 = vadd.f32 0.0, %v2329
      %2331 = vdwg.mxu0
      %2332 = vst [vmem:[%s197] sm:$0xff] %v1915
      %2333 = vst [vmem:[%s197 + $0x8] sm:$0xff] %v1917
      %2334 = vst [vmem:[%s197 + $0x10] sm:$0xff] %v2028
      %2335 = vst [vmem:[%s197 + $0x18] sm:$0xff] %v2030
      %2336 = vst [vmem:[%s197 + $0x20] sm:$0xff] %v2141
      %2337 = vst [vmem:[%s197 + $0x28] sm:$0xff] %v2143
      %2338 = vst [vmem:[%s197 + $0x30] sm:$0xff] %v2254
      %2339 = vst [vmem:[%s197 + $0x38] sm:$0xff] %v2256
      %2340 = vst [vmem:[%s197 + $0x40] sm:$0xff] %v1919
      %2341 = vst [vmem:[%s197 + $0x48] sm:$0xff] %v1921
      %2342 = vst [vmem:[%s197 + $0x50] sm:$0xff] %v2032
      %2343 = vst [vmem:[%s197 + $0x58] sm:$0xff] %v2034
      %2344 = vst [vmem:[%s197 + $0x60] sm:$0xff] %v2145
      %2345 = vst [vmem:[%s197 + $0x68] sm:$0xff] %v2147
      %2346 = vst [vmem:[%s197 + $0x70] sm:$0xff] %v2258
      %2347 = vst [vmem:[%s197 + $0x78] sm:$0xff] %v2260
      %2348 = vst [vmem:[%s197 + $0x80] sm:$0xff] %v1925
      %2349 = vst [vmem:[%s197 + $0x88] sm:$0xff] %v1927
      %2350 = vst [vmem:[%s197 + $0x90] sm:$0xff] %v2038
      %2351 = vst [vmem:[%s197 + $0x98] sm:$0xff] %v2040
      %2352 = vst [vmem:[%s197 + $0xa0] sm:$0xff] %v2151
      %2353 = vst [vmem:[%s197 + $0xa8] sm:$0xff] %v2153
      %2354 = vst [vmem:[%s197 + $0xb0] sm:$0xff] %v2264
      %2355 = vst [vmem:[%s197 + $0xb8] sm:$0xff] %v2266
      %2356 = vst [vmem:[%s197 + $0xc0] sm:$0xff] %v1929
      %2357 = vst [vmem:[%s197 + $0xc8] sm:$0xff] %v1931
      %2358 = vst [vmem:[%s197 + $0xd0] sm:$0xff] %v2042
      %2359 = vst [vmem:[%s197 + $0xd8] sm:$0xff] %v2044
      %2360 = vst [vmem:[%s197 + $0xe0] sm:$0xff] %v2155
      %2361 = vst [vmem:[%s197 + $0xe8] sm:$0xff] %v2157
      %2362 = vst [vmem:[%s197 + $0xf0] sm:$0xff] %v2268
      %2363 = vst [vmem:[%s197 + $0xf8] sm:$0xff] %v2270
      %2364 = vst [vmem:[%s197 + $0x100] sm:$0xff] %v1935
      %2365 = vst [vmem:[%s197 + $0x108] sm:$0xff] %v1937
      %2366 = vst [vmem:[%s197 + $0x110] sm:$0xff] %v2048
      %2367 = vst [vmem:[%s197 + $0x118] sm:$0xff] %v2050
      %2368 = vst [vmem:[%s197 + $0x120] sm:$0xff] %v2161
      %2369 = vst [vmem:[%s197 + $0x128] sm:$0xff] %v2163
      %2370 = vst [vmem:[%s197 + $0x130] sm:$0xff] %v2274
      %2371 = vst [vmem:[%s197 + $0x138] sm:$0xff] %v2276
      %2372 = vst [vmem:[%s197 + $0x140] sm:$0xff] %v1939
      %2373 = vst [vmem:[%s197 + $0x148] sm:$0xff] %v1941
      %2374 = vst [vmem:[%s197 + $0x150] sm:$0xff] %v2052
      %2375 = vst [vmem:[%s197 + $0x158] sm:$0xff] %v2054
      %2376 = vst [vmem:[%s197 + $0x160] sm:$0xff] %v2165
      %2377 = vst [vmem:[%s197 + $0x168] sm:$0xff] %v2167
      %2378 = vst [vmem:[%s197 + $0x170] sm:$0xff] %v2278
      %2379 = vst [vmem:[%s197 + $0x178] sm:$0xff] %v2280
      %2380 = vst [vmem:[%s197 + $0x180] sm:$0xff] %v1945
      %2381 = vst [vmem:[%s197 + $0x188] sm:$0xff] %v1947
      %2382 = vst [vmem:[%s197 + $0x190] sm:$0xff] %v2058
      %2383 = vst [vmem:[%s197 + $0x198] sm:$0xff] %v2060
      %2384 = vst [vmem:[%s197 + $0x1a0] sm:$0xff] %v2171
      %2385 = vst [vmem:[%s197 + $0x1a8] sm:$0xff] %v2173
      %2386 = vst [vmem:[%s197 + $0x1b0] sm:$0xff] %v2284
      %2387 = vst [vmem:[%s197 + $0x1b8] sm:$0xff] %v2286
      %2388 = vst [vmem:[%s197 + $0x1c0] sm:$0xff] %v1949
      %2389 = vst [vmem:[%s197 + $0x1c8] sm:$0xff] %v1951
      %2390 = vst [vmem:[%s197 + $0x1d0] sm:$0xff] %v2062
      %2391 = vst [vmem:[%s197 + $0x1d8] sm:$0xff] %v2064
      %2392 = vst [vmem:[%s197 + $0x1e0] sm:$0xff] %v2175
      %2393 = vst [vmem:[%s197 + $0x1e8] sm:$0xff] %v2177
      %2394 = vst [vmem:[%s197 + $0x1f0] sm:$0xff] %v2288
      %2395 = vst [vmem:[%s197 + $0x1f8] sm:$0xff] %v2290
      %2396 = vst [vmem:[%s197 + $0x200] sm:$0xff] %v1955
      %2397 = vst [vmem:[%s197 + $0x208] sm:$0xff] %v1957
      %2398 = vst [vmem:[%s197 + $0x210] sm:$0xff] %v2068
      %2399 = vst [vmem:[%s197 + $0x218] sm:$0xff] %v2070
      %2400 = vst [vmem:[%s197 + $0x220] sm:$0xff] %v2181
      %2401 = vst [vmem:[%s197 + $0x228] sm:$0xff] %v2183
      %2402 = vst [vmem:[%s197 + $0x230] sm:$0xff] %v2294
      %2403 = vst [vmem:[%s197 + $0x238] sm:$0xff] %v2296
      %2404 = vst [vmem:[%s197 + $0x240] sm:$0xff] %v1959
      %2405 = vst [vmem:[%s197 + $0x248] sm:$0xff] %v1961
      %2406 = vst [vmem:[%s197 + $0x250] sm:$0xff] %v2072
      %2407 = vst [vmem:[%s197 + $0x258] sm:$0xff] %v2074
      %2408 = vst [vmem:[%s197 + $0x260] sm:$0xff] %v2185
      %2409 = vst [vmem:[%s197 + $0x268] sm:$0xff] %v2187
      %2410 = vst [vmem:[%s197 + $0x270] sm:$0xff] %v2298
      %2411 = vst [vmem:[%s197 + $0x278] sm:$0xff] %v2300
      %2412 = vst [vmem:[%s197 + $0x280] sm:$0xff] %v1965
      %2413 = vst [vmem:[%s197 + $0x288] sm:$0xff] %v1967
      %2414 = vst [vmem:[%s197 + $0x290] sm:$0xff] %v2078
      %2415 = vst [vmem:[%s197 + $0x298] sm:$0xff] %v2080
      %2416 = vst [vmem:[%s197 + $0x2a0] sm:$0xff] %v2191
      %2417 = vst [vmem:[%s197 + $0x2a8] sm:$0xff] %v2193
      %2418 = vst [vmem:[%s197 + $0x2b0] sm:$0xff] %v2304
      %2419 = vst [vmem:[%s197 + $0x2b8] sm:$0xff] %v2306
      %2420 = vst [vmem:[%s197 + $0x2c0] sm:$0xff] %v1969
      %2421 = vst [vmem:[%s197 + $0x2c8] sm:$0xff] %v1971
      %2422 = vst [vmem:[%s197 + $0x2d0] sm:$0xff] %v2082
      %2423 = vst [vmem:[%s197 + $0x2d8] sm:$0xff] %v2084
      %2424 = vst [vmem:[%s197 + $0x2e0] sm:$0xff] %v2195
      %2425 = vst [vmem:[%s197 + $0x2e8] sm:$0xff] %v2197
      %2426 = vst [vmem:[%s197 + $0x2f0] sm:$0xff] %v2308
      %2427 = vst [vmem:[%s197 + $0x2f8] sm:$0xff] %v2310
      %2428 = vst [vmem:[%s197 + $0x300] sm:$0xff] %v1975
      %2429 = vst [vmem:[%s197 + $0x308] sm:$0xff] %v1977
      %2430 = vst [vmem:[%s197 + $0x310] sm:$0xff] %v2088
      %2431 = vst [vmem:[%s197 + $0x318] sm:$0xff] %v2090
      %2432 = vst [vmem:[%s197 + $0x320] sm:$0xff] %v2201
      %2433 = vst [vmem:[%s197 + $0x328] sm:$0xff] %v2203
      %2434 = vst [vmem:[%s197 + $0x330] sm:$0xff] %v2314
      %2435 = vst [vmem:[%s197 + $0x338] sm:$0xff] %v2316
      %2436 = vst [vmem:[%s197 + $0x340] sm:$0xff] %v1979
      %2437 = vst [vmem:[%s197 + $0x348] sm:$0xff] %v1981
      %2438 = vst [vmem:[%s197 + $0x350] sm:$0xff] %v2092
      %2439 = vst [vmem:[%s197 + $0x358] sm:$0xff] %v2094
      %2440 = vst [vmem:[%s197 + $0x360] sm:$0xff] %v2205
      %2441 = vst [vmem:[%s197 + $0x368] sm:$0xff] %v2207
      %2442 = vst [vmem:[%s197 + $0x370] sm:$0xff] %v2318
      %2443 = vst [vmem:[%s197 + $0x378] sm:$0xff] %v2320
      %2444 = vst [vmem:[%s197 + $0x380] sm:$0xff] %v1985
      %2445 = vst [vmem:[%s197 + $0x388] sm:$0xff] %v1987
      %2446 = vst [vmem:[%s197 + $0x390] sm:$0xff] %v2098
      %2447 = vst [vmem:[%s197 + $0x398] sm:$0xff] %v2100
      %2448 = vst [vmem:[%s197 + $0x3a0] sm:$0xff] %v2211
      %2449 = vst [vmem:[%s197 + $0x3a8] sm:$0xff] %v2213
      %2450 = vst [vmem:[%s197 + $0x3b0] sm:$0xff] %v2324
      %2451 = vst [vmem:[%s197 + $0x3b8] sm:$0xff] %v2326
      %2452 = vst [vmem:[%s197 + $0x3c0] sm:$0xff] %v1989
      %2453 = vst [vmem:[%s197 + $0x3c8] sm:$0xff] %v1991
      %2454 = vst [vmem:[%s197 + $0x3d0] sm:$0xff] %v2102
      %2455 = vst [vmem:[%s197 + $0x3d8] sm:$0xff] %v2104
      %2456 = vst [vmem:[%s197 + $0x3e0] sm:$0xff] %v2215
      %2457 = vst [vmem:[%s197 + $0x3e8] sm:$0xff] %v2217
      %2458 = vst [vmem:[%s197 + $0x3f0] sm:$0xff] %v2328
      %2459 = vst [vmem:[%s197 + $0x3f8] sm:$0xff] %v2330
      %p2460 = scmp.lt.s32.totalorder %s15, 1
      %s2461 = scalar_select %p2460, %s15, 1
      %s2462 = smul.addr %s2461, 128
      %s2463 = smul.addr %s2462, 8
      %s2464 = scalar_lea.vmem %s4, %s2463
      // Predicated region
      $region37: #{ppm.1} parent=35 // pred_check
        %p2465 = pneg %p122
      $region38: #{ppm.1} parent=35 // pred_check_branch
        %2467 = sbr.rel (%p2465) target = $region40
      $region39: #{ppm.1} parent=35 // pred_region
        _
      $region40: #{ppm.1} parent=35 // pred_fallthru
        _
    $region36: #{ppm.1} parent=5 // pred_fallthru
      _
    %p2468 = scmp.le.s32.totalorder 2, %s10
    // Predicated region
    $region41: #{ppm.1} parent=5 // pred_check
      %p2469 = pneg %p2468
    $region42: #{ppm.1} parent=5 // pred_check_branch
      %2471 = sbr.rel (%p2469) target = $region44
    $region43: #{ppm.1} parent=5 // pred_region
      %s2472 = ssub.s32 %s10, 2
      // Predicated region
      $region45: #{ppm.1} parent=43 // pred_check
        %p2473 = pneg %p128
      $region46: #{ppm.1} parent=43 // pred_check_branch
        %2475 = sbr.rel (%p2473) target = $region48
      $region47: #{ppm.1} parent=43 // pred_region
        %p2476 = scmp.lt.s32.totalorder %s16, 1
        %s2477 = scalar_select %p2476, %s16, 1
        %s2478 = smul.addr %s2477, 128
        %s2479 = smul.addr %s2478, 8
        %s2480 = scalar_lea.vmem %s4, %s2479
      $region48: #{ppm.1} parent=43 // pred_fallthru
        _
    $region44: #{ppm.1} parent=5 // pred_fallthru
      _
  $region6: #{ppm.1} parent=0 // loop_footer
    %s14 = sadd.s32 1, %s10
  $region7: #{ppm.1} parent=0 // loop_footer_branch
    %9 = sbr.rel target = $region3
  $region8: #{ppm.1} parent=0 // loop_exit
    _

</llo_original>
